<compile_context>
chip_gen: v7x
topology: tpu7x:2x2x1
jax: 0.10.0
libtpu: 0.0.40
codegen_flags: <defaults>
</compile_context>

<pallas_src>
import jax
import jax.numpy as jnp
import numpy as np
from jax import lax
from jax.experimental import pallas as pl
from jax.experimental.pallas import tpu as pltpu

# ------------------------------ config ------------------------------
B = 2          # batch
T = 32         # sequence length
DIM = 16       # model dim
EXPANSION = 2
INNER = DIM * EXPANSION      # 32
K = 31                       # kernel_size (module default)
PAD = K // 2                 # calc_same_padding(31) == (15, 15); symmetric for odd K
LN_EPS = 1e-5

# Depthwise-conv padding layout (sublane-aligned):
LPAD = ((PAD + 7) // 8) * 8  # 16: front zero-pad rounded up to a sublane multiple
OFF = LPAD - PAD             # 1 : tap k reads row (t + k + OFF) of the padded frame
SEG = LPAD + T + LPAD        # 64: per-batch segment length (multiple of 8)
NSHIFT = 8                   # one shifted copy per sublane residue

assert T % 8 == 0 and SEG % 8 == 0
assert SEG >= T + (K - 1) + OFF          # every tap stays inside its own segment


# ------------------------------ kernel ------------------------------
def lynx_conv_kernel(x_ref, w1_ref, dw_ref, w2_ref, slab_ref, o_ref):
    # Whole batch in one invocation: flatten to (B*T, DIM) rows for the matmuls.
    x = jnp.concatenate([x_ref[b] for b in range(B)], axis=0)        # (B*T, DIM)

    # Per-channel vectors, packed into one (8,128) VMEM tile (single DMA).
    slab = slab_ref[...]
    b1v = slab[0, :2 * INNER]      # conv1 bias with LN affine folded in
    bdwv = slab[1, :INNER]         # depthwise-conv bias
    alphav = slab[2, :INNER]       # PReLU per-channel alpha
    b2v = slab[3, :DIM]            # conv2 bias

    # ---- LayerNorm over channels, single pass (affine folded into w1/b1) ----
    inv_d = 1.0 / DIM
    mean = jnp.sum(x, axis=-1, keepdims=True) * inv_d
    meansq = jnp.sum(x * x, axis=-1, keepdims=True) * inv_d
    var = meansq - mean * mean
    xn = (x - mean) * lax.rsqrt(var + LN_EPS)                         # (B*T, DIM)

    # ---- pointwise Conv1d(dim, 2*inner, 1) == batched-row matmul ----
    h = jnp.dot(xn, w1_ref[...], preferred_element_type=jnp.float32) + b1v  # (B*T, 2*INNER)

    # ---- SwiGLU: value * silu(gate) ----
    a = h[:, :INNER]
    g = h[:, INNER:]
    y = a * (g * jax.nn.sigmoid(g))                                   # (B*T, INNER)

    # ---- depthwise Conv1d(inner, inner, K, padding='same', groups=inner) ----
    # Build NSHIFT sublane-shifted, zero-padded copies of the batched sequence so
    # that every tap becomes a sublane-ALIGNED slice + mul-add.
    #   shifted[s][i] == comb[i + s], where comb holds batch b's sequence at rows
    #   [b*SEG + LPAD, b*SEG + LPAD + T) and zeros elsewhere.
    def build_shifted(s):
        pieces = [jnp.zeros((LPAD - s, INNER), jnp.float32)]
        for b in range(B):
            pieces.append(y[b * T:(b + 1) * T, :])
            tail = (SEG - T) if b < B - 1 else (LPAD + s)
            pieces.append(jnp.zeros((tail, INNER), jnp.float32))
        return jnp.concatenate(pieces, axis=0)                        # (B*SEG, INNER)

    shifted = [build_shifted(s) for s in range(NSHIFT)]

    dwv = dw_ref[...]                                                 # (K, INNER), hoisted once

    conv_rows = []
    for b in range(B):
        base = b * SEG
        # 4 partial accumulators break the 31-deep serial VALU dependence chain.
        parts = [jnp.zeros((T, INNER), jnp.float32) for _ in range(4)]
        for k in range(K):
            s = (k + OFF) % NSHIFT
            q = (k + OFF) // NSHIFT
            start = base + NSHIFT * q                                  # multiple of 8 -> aligned
            parts[k % 4] = parts[k % 4] + shifted[s][start:start + T, :] * dwv[k, :]
        conv_rows.append((parts[0] + parts[1]) + (parts[2] + parts[3]))
    yc = jnp.concatenate(conv_rows, axis=0) + bdwv                     # (B*T, INNER)

    # ---- PReLU (per-channel alpha) ----
    yc = jnp.where(yc >= 0, yc, alphav * yc)

    # ---- pointwise Conv1d(inner, dim, 1) ----
    out = jnp.dot(yc, w2_ref[...], preferred_element_type=jnp.float32) + b2v  # (B*T, DIM)

    # dropout(p=0.0) == Identity
    for b in range(B):
        o_ref[b] = out[b * T:(b + 1) * T, :].astype(o_ref.dtype)


def lynx_conv_module(x, params):
    (gamma, beta, w1, b1, dw, bdw, alpha, w2, b2) = params

    # Fold LayerNorm affine into the first pointwise conv (wrapper-side, zero kernel cost):
    #   (xn*gamma + beta) @ w1 + b1 == xn @ (diag(gamma) @ w1) + (beta @ w1 + b1)
    w1f = gamma[0][:, None] * w1                    # (DIM, 2*INNER)
    b1f = b1[0] + beta[0] @ w1                      # (2*INNER,)

    # Pack the tiny per-channel vectors into a single lane-dense (8,128) slab:
    # one DMA / one VMEM tile instead of four separate (1,C) inputs.
    slab = jnp.zeros((8, 128), jnp.float32)
    slab = slab.at[0, :2 * INNER].set(b1f)
    slab = slab.at[1, :INNER].set(bdw[0])
    slab = slab.at[2, :INNER].set(alpha[0])
    slab = slab.at[3, :DIM].set(b2[0])

    # Single invocation (no grid): the kernel is overhead-bound at these shapes,
    # so the whole batch is one step; all blocks equal full arrays (VMEM-resident,
    # no pipelining, so weights are not double-buffered).
    return pl.pallas_call(
        lynx_conv_kernel,
        out_shape=jax.ShapeDtypeStruct((B, T, DIM), jnp.float32),
    )(x, w1f, dw, w2, slab)


# --------------------------- JAX reference (unfused) ---------------------------
def reference(x, params):
    (gamma, beta, w1, b1, dw, bdw, alpha, w2, b2) = params
    mean = x.mean(-1, keepdims=True)
    var = ((x - mean) ** 2).mean(-1, keepdims=True)
    xn = (x - mean) / jnp.sqrt(var + LN_EPS) * gamma[0] + beta[0]
    h = xn @ w1 + b1[0]
    a, g = h[..., :INNER], h[..., INNER:]
    y = a * jax.nn.silu(g)
    yp = jnp.pad(y, ((0, 0), (PAD, PAD), (0, 0)))
    acc = jnp.zeros_like(y)
    for k in range(K):
        acc = acc + yp[:, k:k + T, :] * dw[k]
    acc = acc + bdw[0]
    acc = jnp.where(acc >= 0, acc, alpha[0] * acc)
    return acc @ w2 + b2[0]


# ------------------------------ main ------------------------------
if __name__ == "__main__":
    key = jax.random.PRNGKey(0)
    kx, kg, kb, k1, k2, k3, k4, k5, k6 = jax.random.split(key, 9)

    x = jax.random.normal(kx, (B, T, DIM), jnp.float32)

    # deterministic synthetic parameters (non-trivial gamma/beta to exercise the fold)
    gamma = 1.0 + 0.1 * jax.random.normal(kg, (1, DIM), jnp.float32)        # LayerNorm weight
    beta = 0.1 * jax.random.normal(kb, (1, DIM), jnp.float32)               # LayerNorm bias
    w1 = 0.1 * jax.random.normal(k1, (DIM, 2 * INNER), jnp.float32)         # Conv1d(dim, 2*inner, 1)
    b1 = 0.1 * jax.random.normal(k2, (1, 2 * INNER), jnp.float32)
    dw = 0.1 * jax.random.normal(k3, (K, INNER), jnp.float32)               # depthwise Conv1d weights
    bdw = 0.1 * jax.random.normal(k4, (1, INNER), jnp.float32)
    alpha = jnp.full((1, INNER), 0.25, jnp.float32)                         # PReLU init
    w2 = 0.1 * jax.random.normal(k5, (INNER, DIM), jnp.float32)             # Conv1d(inner, dim, 1)
    b2 = 0.1 * jax.random.normal(k6, (1, DIM), jnp.float32)

    params = (gamma, beta, w1, b1, dw, bdw, alpha, w2, b2)

    out = lynx_conv_module(x, params)
    out = jax.block_until_ready(out)

    ref = reference(x, params)
    np.testing.assert_allclose(np.asarray(out), np.asarray(ref), atol=1e-4, rtol=1e-4)

    print("KERNEL_OK")
</pallas_src>

<mosaic_0001>
module attributes {stable_mosaic.version = 11 : i64} {
  func.func @lynx_conv_kernel(%arg0: memref<2x32x16xf32, #tpu.memory_space<vmem>>, %arg1: memref<16x64xf32, #tpu.memory_space<vmem>>, %arg2: memref<31x32xf32, #tpu.memory_space<vmem>>, %arg3: memref<32x16xf32, #tpu.memory_space<vmem>>, %arg4: memref<8x128xf32, #tpu.memory_space<vmem>>, %arg5: memref<2x32x16xf32, #tpu.memory_space<vmem>>) attributes {dimension_semantics = [], scalar_prefetch = 0 : i64, scratch_operands = 0 : i64, tpu.core_type = #tpu.core_type<tc>} {
    %c0 = arith.constant 0 : index
    %c0_0 = arith.constant 0 : index
    %c0_1 = arith.constant 0 : index
    %0 = vector.load %arg0[%c0, %c0_0, %c0_1] : memref<2x32x16xf32, #tpu.memory_space<vmem>>, vector<1x32x16xf32>
    %1 = vector.shape_cast %0 : vector<1x32x16xf32> to vector<32x16xf32>
    %c1 = arith.constant 1 : index
    %c0_2 = arith.constant 0 : index
    %c0_3 = arith.constant 0 : index
    %2 = vector.load %arg0[%c1, %c0_2, %c0_3] : memref<2x32x16xf32, #tpu.memory_space<vmem>>, vector<1x32x16xf32>
    %3 = vector.shape_cast %2 : vector<1x32x16xf32> to vector<32x16xf32>
    %4 = tpu.concatenate %1, %3 in 0 : vector<32x16xf32>, vector<32x16xf32> -> vector<64x16xf32>
    %c0_4 = arith.constant 0 : index
    %c0_5 = arith.constant 0 : index
    %5 = vector.load %arg4[%c0_4, %c0_5] : memref<8x128xf32, #tpu.memory_space<vmem>>, vector<8x128xf32>
    %6 = vector.extract_strided_slice %5 {offsets = [0, 0], sizes = [1, 64], strides = [1, 1]} : vector<8x128xf32> to vector<1x64xf32>
    %7 = vector.shape_cast %6 : vector<1x64xf32> to vector<64xf32>
    %8 = vector.extract_strided_slice %5 {offsets = [1, 0], sizes = [1, 32], strides = [1, 1]} : vector<8x128xf32> to vector<1x32xf32>
    %9 = vector.shape_cast %8 : vector<1x32xf32> to vector<32xf32>
    %10 = vector.extract_strided_slice %5 {offsets = [2, 0], sizes = [1, 32], strides = [1, 1]} : vector<8x128xf32> to vector<1x32xf32>
    %11 = vector.shape_cast %10 : vector<1x32xf32> to vector<32xf32>
    %12 = vector.extract_strided_slice %5 {offsets = [3, 0], sizes = [1, 16], strides = [1, 1]} : vector<8x128xf32> to vector<1x16xf32>
    %13 = vector.shape_cast %12 : vector<1x16xf32> to vector<16xf32>
    %cst = arith.constant dense<0.000000e+00> : vector<64xf32>
    %14 = vector.multi_reduction <add>, %4, %cst [1] : vector<64x16xf32> to vector<64xf32>
    %15 = vector.shape_cast %14 : vector<64xf32> to vector<64x1xf32>
    %cst_6 = arith.constant 6.250000e-02 : f32
    %16 = vector.broadcast %cst_6 : f32 to vector<64x1xf32>
    %17 = arith.mulf %15, %16 : vector<64x1xf32>
    %18 = arith.mulf %4, %4 : vector<64x16xf32>
    %cst_7 = arith.constant dense<0.000000e+00> : vector<64xf32>
    %19 = vector.multi_reduction <add>, %18, %cst_7 [1] : vector<64x16xf32> to vector<64xf32>
    %20 = vector.shape_cast %19 : vector<64xf32> to vector<64x1xf32>
    %cst_8 = arith.constant 6.250000e-02 : f32
    %21 = vector.broadcast %cst_8 : f32 to vector<64x1xf32>
    %22 = arith.mulf %20, %21 : vector<64x1xf32>
    %23 = arith.mulf %17, %17 : vector<64x1xf32>
    %24 = arith.subf %22, %23 : vector<64x1xf32>
    %25 = vector.broadcast %17 : vector<64x1xf32> to vector<64x16xf32>
    %26 = arith.subf %4, %25 : vector<64x16xf32>
    %cst_9 = arith.constant 9.99999974E-6 : f32
    %27 = vector.broadcast %cst_9 : f32 to vector<64x1xf32>
    %28 = arith.addf %24, %27 : vector<64x1xf32>
    %29 = math.rsqrt %28 : vector<64x1xf32>
    %30 = vector.broadcast %29 : vector<64x1xf32> to vector<64x16xf32>
    %31 = arith.mulf %26, %30 : vector<64x16xf32>
    %c0_10 = arith.constant 0 : index
    %c0_11 = arith.constant 0 : index
    %32 = vector.load %arg1[%c0_10, %c0_11] : memref<16x64xf32, #tpu.memory_space<vmem>>, vector<16x64xf32>
    %cst_12 = arith.constant dense<0.000000e+00> : vector<64x64xf32>
    %33 = tpu.matmul %31, %32, %cst_12 {dimension_numbers = #tpu.dot_dimension_numbers<[1], [0], [0], [1], [0, 0, 1, 1], [], []>} : vector<64x16xf32>, vector<16x64xf32>, vector<64x64xf32> -> vector<64x64xf32>
    %34 = vector.shape_cast %7 : vector<64xf32> to vector<1x64xf32>
    %35 = vector.broadcast %34 : vector<1x64xf32> to vector<64x64xf32>
    %36 = arith.addf %33, %35 : vector<64x64xf32>
    %37 = vector.extract_strided_slice %36 {offsets = [0, 0], sizes = [64, 32], strides = [1, 1]} : vector<64x64xf32> to vector<64x32xf32>
    %38 = vector.extract_strided_slice %36 {offsets = [0, 32], sizes = [64, 32], strides = [1, 1]} : vector<64x64xf32> to vector<64x32xf32>
    %39 = arith.negf %38 : vector<64x32xf32>
    %40 = math.exp %39 : vector<64x32xf32>
    %cst_13 = arith.constant 1.000000e+00 : f32
    %41 = vector.broadcast %cst_13 : f32 to vector<64x32xf32>
    %42 = arith.addf %41, %40 : vector<64x32xf32>
    %43 = arith.divf %41, %42 : vector<64x32xf32>
    %44 = arith.mulf %38, %43 : vector<64x32xf32>
    %45 = arith.mulf %37, %44 : vector<64x32xf32>
    %cst_14 = arith.constant 0.000000e+00 : f32
    %46 = vector.broadcast %cst_14 : f32 to vector<16x32xf32>
    %47 = vector.extract_strided_slice %45 {offsets = [0, 0], sizes = [32, 32], strides = [1, 1]} : vector<64x32xf32> to vector<32x32xf32>
    %cst_15 = arith.constant 0.000000e+00 : f32
    %48 = vector.broadcast %cst_15 : f32 to vector<32x32xf32>
    %49 = vector.extract_strided_slice %45 {offsets = [32, 0], sizes = [32, 32], strides = [1, 1]} : vector<64x32xf32> to vector<32x32xf32>
    %cst_16 = arith.constant 0.000000e+00 : f32
    %50 = vector.broadcast %cst_16 : f32 to vector<16x32xf32>
    %51 = tpu.concatenate %46, %47, %48, %49, %50 in 0 : vector<16x32xf32>, vector<32x32xf32>, vector<32x32xf32>, vector<32x32xf32>, vector<16x32xf32> -> vector<128x32xf32>
    %cst_17 = arith.constant 0.000000e+00 : f32
    %52 = vector.broadcast %cst_17 : f32 to vector<15x32xf32>
    %53 = vector.extract_strided_slice %45 {offsets = [0, 0], sizes = [32, 32], strides = [1, 1]} : vector<64x32xf32> to vector<32x32xf32>
    %cst_18 = arith.constant 0.000000e+00 : f32
    %54 = vector.broadcast %cst_18 : f32 to vector<32x32xf32>
    %55 = vector.extract_strided_slice %45 {offsets = [32, 0], sizes = [32, 32], strides = [1, 1]} : vector<64x32xf32> to vector<32x32xf32>
    %cst_19 = arith.constant 0.000000e+00 : f32
    %56 = vector.broadcast %cst_19 : f32 to vector<17x32xf32>
    %57 = tpu.concatenate %52, %53, %54, %55, %56 in 0 : vector<15x32xf32>, vector<32x32xf32>, vector<32x32xf32>, vector<32x32xf32>, vector<17x32xf32> -> vector<128x32xf32>
    %cst_20 = arith.constant 0.000000e+00 : f32
    %58 = vector.broadcast %cst_20 : f32 to vector<14x32xf32>
    %59 = vector.extract_strided_slice %45 {offsets = [0, 0], sizes = [32, 32], strides = [1, 1]} : vector<64x32xf32> to vector<32x32xf32>
    %cst_21 = arith.constant 0.000000e+00 : f32
    %60 = vector.broadcast %cst_21 : f32 to vector<32x32xf32>
    %61 = vector.extract_strided_slice %45 {offsets = [32, 0], sizes = [32, 32], strides = [1, 1]} : vector<64x32xf32> to vector<32x32xf32>
    %cst_22 = arith.constant 0.000000e+00 : f32
    %62 = vector.broadcast %cst_22 : f32 to vector<18x32xf32>
    %63 = tpu.concatenate %58, %59, %60, %61, %62 in 0 : vector<14x32xf32>, vector<32x32xf32>, vector<32x32xf32>, vector<32x32xf32>, vector<18x32xf32> -> vector<128x32xf32>
    %cst_23 = arith.constant 0.000000e+00 : f32
    %64 = vector.broadcast %cst_23 : f32 to vector<13x32xf32>
    %65 = vector.extract_strided_slice %45 {offsets = [0, 0], sizes = [32, 32], strides = [1, 1]} : vector<64x32xf32> to vector<32x32xf32>
    %cst_24 = arith.constant 0.000000e+00 : f32
    %66 = vector.broadcast %cst_24 : f32 to vector<32x32xf32>
    %67 = vector.extract_strided_slice %45 {offsets = [32, 0], sizes = [32, 32], strides = [1, 1]} : vector<64x32xf32> to vector<32x32xf32>
    %cst_25 = arith.constant 0.000000e+00 : f32
    %68 = vector.broadcast %cst_25 : f32 to vector<19x32xf32>
    %69 = tpu.concatenate %64, %65, %66, %67, %68 in 0 : vector<13x32xf32>, vector<32x32xf32>, vector<32x32xf32>, vector<32x32xf32>, vector<19x32xf32> -> vector<128x32xf32>
    %cst_26 = arith.constant 0.000000e+00 : f32
    %70 = vector.broadcast %cst_26 : f32 to vector<12x32xf32>
    %71 = vector.extract_strided_slice %45 {offsets = [0, 0], sizes = [32, 32], strides = [1, 1]} : vector<64x32xf32> to vector<32x32xf32>
    %cst_27 = arith.constant 0.000000e+00 : f32
    %72 = vector.broadcast %cst_27 : f32 to vector<32x32xf32>
    %73 = vector.extract_strided_slice %45 {offsets = [32, 0], sizes = [32, 32], strides = [1, 1]} : vector<64x32xf32> to vector<32x32xf32>
    %cst_28 = arith.constant 0.000000e+00 : f32
    %74 = vector.broadcast %cst_28 : f32 to vector<20x32xf32>
    %75 = tpu.concatenate %70, %71, %72, %73, %74 in 0 : vector<12x32xf32>, vector<32x32xf32>, vector<32x32xf32>, vector<32x32xf32>, vector<20x32xf32> -> vector<128x32xf32>
    %cst_29 = arith.constant 0.000000e+00 : f32
    %76 = vector.broadcast %cst_29 : f32 to vector<11x32xf32>
    %77 = vector.extract_strided_slice %45 {offsets = [0, 0], sizes = [32, 32], strides = [1, 1]} : vector<64x32xf32> to vector<32x32xf32>
    %cst_30 = arith.constant 0.000000e+00 : f32
    %78 = vector.broadcast %cst_30 : f32 to vector<32x32xf32>
    %79 = vector.extract_strided_slice %45 {offsets = [32, 0], sizes = [32, 32], strides = [1, 1]} : vector<64x32xf32> to vector<32x32xf32>
    %cst_31 = arith.constant 0.000000e+00 : f32
    %80 = vector.broadcast %cst_31 : f32 to vector<21x32xf32>
    %81 = tpu.concatenate %76, %77, %78, %79, %80 in 0 : vector<11x32xf32>, vector<32x32xf32>, vector<32x32xf32>, vector<32x32xf32>, vector<21x32xf32> -> vector<128x32xf32>
    %cst_32 = arith.constant 0.000000e+00 : f32
    %82 = vector.broadcast %cst_32 : f32 to vector<10x32xf32>
    %83 = vector.extract_strided_slice %45 {offsets = [0, 0], sizes = [32, 32], strides = [1, 1]} : vector<64x32xf32> to vector<32x32xf32>
    %cst_33 = arith.constant 0.000000e+00 : f32
    %84 = vector.broadcast %cst_33 : f32 to vector<32x32xf32>
    %85 = vector.extract_strided_slice %45 {offsets = [32, 0], sizes = [32, 32], strides = [1, 1]} : vector<64x32xf32> to vector<32x32xf32>
    %cst_34 = arith.constant 0.000000e+00 : f32
    %86 = vector.broadcast %cst_34 : f32 to vector<22x32xf32>
    %87 = tpu.concatenate %82, %83, %84, %85, %86 in 0 : vector<10x32xf32>, vector<32x32xf32>, vector<32x32xf32>, vector<32x32xf32>, vector<22x32xf32> -> vector<128x32xf32>
    %cst_35 = arith.constant 0.000000e+00 : f32
    %88 = vector.broadcast %cst_35 : f32 to vector<9x32xf32>
    %89 = vector.extract_strided_slice %45 {offsets = [0, 0], sizes = [32, 32], strides = [1, 1]} : vector<64x32xf32> to vector<32x32xf32>
    %cst_36 = arith.constant 0.000000e+00 : f32
    %90 = vector.broadcast %cst_36 : f32 to vector<32x32xf32>
    %91 = vector.extract_strided_slice %45 {offsets = [32, 0], sizes = [32, 32], strides = [1, 1]} : vector<64x32xf32> to vector<32x32xf32>
    %cst_37 = arith.constant 0.000000e+00 : f32
    %92 = vector.broadcast %cst_37 : f32 to vector<23x32xf32>
    %93 = tpu.concatenate %88, %89, %90, %91, %92 in 0 : vector<9x32xf32>, vector<32x32xf32>, vector<32x32xf32>, vector<32x32xf32>, vector<23x32xf32> -> vector<128x32xf32>
    %c0_38 = arith.constant 0 : index
    %c0_39 = arith.constant 0 : index
    %94 = vector.load %arg2[%c0_38, %c0_39] : memref<31x32xf32, #tpu.memory_space<vmem>>, vector<31x32xf32>
    %cst_40 = arith.constant 0.000000e+00 : f32
    %95 = vector.broadcast %cst_40 : f32 to vector<32x32xf32>
    %cst_41 = arith.constant 0.000000e+00 : f32
    %96 = vector.broadcast %cst_41 : f32 to vector<32x32xf32>
    %cst_42 = arith.constant 0.000000e+00 : f32
    %97 = vector.broadcast %cst_42 : f32 to vector<32x32xf32>
    %cst_43 = arith.constant 0.000000e+00 : f32
    %98 = vector.broadcast %cst_43 : f32 to vector<32x32xf32>
    %99 = vector.extract_strided_slice %57 {offsets = [0, 0], sizes = [32, 32], strides = [1, 1]} : vector<128x32xf32> to vector<32x32xf32>
    %100 = vector.extract_strided_slice %94 {offsets = [0, 0], sizes = [1, 32], strides = [1, 1]} : vector<31x32xf32> to vector<1x32xf32>
    %101 = vector.shape_cast %100 : vector<1x32xf32> to vector<32xf32>
    %102 = vector.shape_cast %101 : vector<32xf32> to vector<1x32xf32>
    %103 = vector.broadcast %102 : vector<1x32xf32> to vector<32x32xf32>
    %104 = arith.mulf %99, %103 : vector<32x32xf32>
    %105 = arith.addf %95, %104 : vector<32x32xf32>
    %106 = vector.extract_strided_slice %63 {offsets = [0, 0], sizes = [32, 32], strides = [1, 1]} : vector<128x32xf32> to vector<32x32xf32>
    %107 = vector.extract_strided_slice %94 {offsets = [1, 0], sizes = [1, 32], strides = [1, 1]} : vector<31x32xf32> to vector<1x32xf32>
    %108 = vector.shape_cast %107 : vector<1x32xf32> to vector<32xf32>
    %109 = vector.shape_cast %108 : vector<32xf32> to vector<1x32xf32>
    %110 = vector.broadcast %109 : vector<1x32xf32> to vector<32x32xf32>
    %111 = arith.mulf %106, %110 : vector<32x32xf32>
    %112 = arith.addf %96, %111 : vector<32x32xf32>
    %113 = vector.extract_strided_slice %69 {offsets = [0, 0], sizes = [32, 32], strides = [1, 1]} : vector<128x32xf32> to vector<32x32xf32>
    %114 = vector.extract_strided_slice %94 {offsets = [2, 0], sizes = [1, 32], strides = [1, 1]} : vector<31x32xf32> to vector<1x32xf32>
    %115 = vector.shape_cast %114 : vector<1x32xf32> to vector<32xf32>
    %116 = vector.shape_cast %115 : vector<32xf32> to vector<1x32xf32>
    %117 = vector.broadcast %116 : vector<1x32xf32> to vector<32x32xf32>
    %118 = arith.mulf %113, %117 : vector<32x32xf32>
    %119 = arith.addf %97, %118 : vector<32x32xf32>
    %120 = vector.extract_strided_slice %75 {offsets = [0, 0], sizes = [32, 32], strides = [1, 1]} : vector<128x32xf32> to vector<32x32xf32>
    %121 = vector.extract_strided_slice %94 {offsets = [3, 0], sizes = [1, 32], strides = [1, 1]} : vector<31x32xf32> to vector<1x32xf32>
    %122 = vector.shape_cast %121 : vector<1x32xf32> to vector<32xf32>
    %123 = vector.shape_cast %122 : vector<32xf32> to vector<1x32xf32>
    %124 = vector.broadcast %123 : vector<1x32xf32> to vector<32x32xf32>
    %125 = arith.mulf %120, %124 : vector<32x32xf32>
    %126 = arith.addf %98, %125 : vector<32x32xf32>
    %127 = vector.extract_strided_slice %81 {offsets = [0, 0], sizes = [32, 32], strides = [1, 1]} : vector<128x32xf32> to vector<32x32xf32>
    %128 = vector.extract_strided_slice %94 {offsets = [4, 0], sizes = [1, 32], strides = [1, 1]} : vector<31x32xf32> to vector<1x32xf32>
    %129 = vector.shape_cast %128 : vector<1x32xf32> to vector<32xf32>
    %130 = vector.shape_cast %129 : vector<32xf32> to vector<1x32xf32>
    %131 = vector.broadcast %130 : vector<1x32xf32> to vector<32x32xf32>
    %132 = arith.mulf %127, %131 : vector<32x32xf32>
    %133 = arith.addf %105, %132 : vector<32x32xf32>
    %134 = vector.extract_strided_slice %87 {offsets = [0, 0], sizes = [32, 32], strides = [1, 1]} : vector<128x32xf32> to vector<32x32xf32>
    %135 = vector.extract_strided_slice %94 {offsets = [5, 0], sizes = [1, 32], strides = [1, 1]} : vector<31x32xf32> to vector<1x32xf32>
    %136 = vector.shape_cast %135 : vector<1x32xf32> to vector<32xf32>
    %137 = vector.shape_cast %136 : vector<32xf32> to vector<1x32xf32>
    %138 = vector.broadcast %137 : vector<1x32xf32> to vector<32x32xf32>
    %139 = arith.mulf %134, %138 : vector<32x32xf32>
    %140 = arith.addf %112, %139 : vector<32x32xf32>
    %141 = vector.extract_strided_slice %93 {offsets = [0, 0], sizes = [32, 32], strides = [1, 1]} : vector<128x32xf32> to vector<32x32xf32>
    %142 = vector.extract_strided_slice %94 {offsets = [6, 0], sizes = [1, 32], strides = [1, 1]} : vector<31x32xf32> to vector<1x32xf32>
    %143 = vector.shape_cast %142 : vector<1x32xf32> to vector<32xf32>
    %144 = vector.shape_cast %143 : vector<32xf32> to vector<1x32xf32>
    %145 = vector.broadcast %144 : vector<1x32xf32> to vector<32x32xf32>
    %146 = arith.mulf %141, %145 : vector<32x32xf32>
    %147 = arith.addf %119, %146 : vector<32x32xf32>
    %148 = vector.extract_strided_slice %51 {offsets = [8, 0], sizes = [32, 32], strides = [1, 1]} : vector<128x32xf32> to vector<32x32xf32>
    %149 = vector.extract_strided_slice %94 {offsets = [7, 0], sizes = [1, 32], strides = [1, 1]} : vector<31x32xf32> to vector<1x32xf32>
    %150 = vector.shape_cast %149 : vector<1x32xf32> to vector<32xf32>
    %151 = vector.shape_cast %150 : vector<32xf32> to vector<1x32xf32>
    %152 = vector.broadcast %151 : vector<1x32xf32> to vector<32x32xf32>
    %153 = arith.mulf %148, %152 : vector<32x32xf32>
    %154 = arith.addf %126, %153 : vector<32x32xf32>
    %155 = vector.extract_strided_slice %57 {offsets = [8, 0], sizes = [32, 32], strides = [1, 1]} : vector<128x32xf32> to vector<32x32xf32>
    %156 = vector.extract_strided_slice %94 {offsets = [8, 0], sizes = [1, 32], strides = [1, 1]} : vector<31x32xf32> to vector<1x32xf32>
    %157 = vector.shape_cast %156 : vector<1x32xf32> to vector<32xf32>
    %158 = vector.shape_cast %157 : vector<32xf32> to vector<1x32xf32>
    %159 = vector.broadcast %158 : vector<1x32xf32> to vector<32x32xf32>
    %160 = arith.mulf %155, %159 : vector<32x32xf32>
    %161 = arith.addf %133, %160 : vector<32x32xf32>
    %162 = vector.extract_strided_slice %63 {offsets = [8, 0], sizes = [32, 32], strides = [1, 1]} : vector<128x32xf32> to vector<32x32xf32>
    %163 = vector.extract_strided_slice %94 {offsets = [9, 0], sizes = [1, 32], strides = [1, 1]} : vector<31x32xf32> to vector<1x32xf32>
    %164 = vector.shape_cast %163 : vector<1x32xf32> to vector<32xf32>
    %165 = vector.shape_cast %164 : vector<32xf32> to vector<1x32xf32>
    %166 = vector.broadcast %165 : vector<1x32xf32> to vector<32x32xf32>
    %167 = arith.mulf %162, %166 : vector<32x32xf32>
    %168 = arith.addf %140, %167 : vector<32x32xf32>
    %169 = vector.extract_strided_slice %69 {offsets = [8, 0], sizes = [32, 32], strides = [1, 1]} : vector<128x32xf32> to vector<32x32xf32>
    %170 = vector.extract_strided_slice %94 {offsets = [10, 0], sizes = [1, 32], strides = [1, 1]} : vector<31x32xf32> to vector<1x32xf32>
    %171 = vector.shape_cast %170 : vector<1x32xf32> to vector<32xf32>
    %172 = vector.shape_cast %171 : vector<32xf32> to vector<1x32xf32>
    %173 = vector.broadcast %172 : vector<1x32xf32> to vector<32x32xf32>
    %174 = arith.mulf %169, %173 : vector<32x32xf32>
    %175 = arith.addf %147, %174 : vector<32x32xf32>
    %176 = vector.extract_strided_slice %75 {offsets = [8, 0], sizes = [32, 32], strides = [1, 1]} : vector<128x32xf32> to vector<32x32xf32>
    %177 = vector.extract_strided_slice %94 {offsets = [11, 0], sizes = [1, 32], strides = [1, 1]} : vector<31x32xf32> to vector<1x32xf32>
    %178 = vector.shape_cast %177 : vector<1x32xf32> to vector<32xf32>
    %179 = vector.shape_cast %178 : vector<32xf32> to vector<1x32xf32>
    %180 = vector.broadcast %179 : vector<1x32xf32> to vector<32x32xf32>
    %181 = arith.mulf %176, %180 : vector<32x32xf32>
    %182 = arith.addf %154, %181 : vector<32x32xf32>
    %183 = vector.extract_strided_slice %81 {offsets = [8, 0], sizes = [32, 32], strides = [1, 1]} : vector<128x32xf32> to vector<32x32xf32>
    %184 = vector.extract_strided_slice %94 {offsets = [12, 0], sizes = [1, 32], strides = [1, 1]} : vector<31x32xf32> to vector<1x32xf32>
    %185 = vector.shape_cast %184 : vector<1x32xf32> to vector<32xf32>
    %186 = vector.shape_cast %185 : vector<32xf32> to vector<1x32xf32>
    %187 = vector.broadcast %186 : vector<1x32xf32> to vector<32x32xf32>
    %188 = arith.mulf %183, %187 : vector<32x32xf32>
    %189 = arith.addf %161, %188 : vector<32x32xf32>
    %190 = vector.extract_strided_slice %87 {offsets = [8, 0], sizes = [32, 32], strides = [1, 1]} : vector<128x32xf32> to vector<32x32xf32>
    %191 = vector.extract_strided_slice %94 {offsets = [13, 0], sizes = [1, 32], strides = [1, 1]} : vector<31x32xf32> to vector<1x32xf32>
    %192 = vector.shape_cast %191 : vector<1x32xf32> to vector<32xf32>
    %193 = vector.shape_cast %192 : vector<32xf32> to vector<1x32xf32>
    %194 = vector.broadcast %193 : vector<1x32xf32> to vector<32x32xf32>
    %195 = arith.mulf %190, %194 : vector<32x32xf32>
    %196 = arith.addf %168, %195 : vector<32x32xf32>
    %197 = vector.extract_strided_slice %93 {offsets = [8, 0], sizes = [32, 32], strides = [1, 1]} : vector<128x32xf32> to vector<32x32xf32>
    %198 = vector.extract_strided_slice %94 {offsets = [14, 0], sizes = [1, 32], strides = [1, 1]} : vector<31x32xf32> to vector<1x32xf32>
    %199 = vector.shape_cast %198 : vector<1x32xf32> to vector<32xf32>
    %200 = vector.shape_cast %199 : vector<32xf32> to vector<1x32xf32>
    %201 = vector.broadcast %200 : vector<1x32xf32> to vector<32x32xf32>
    %202 = arith.mulf %197, %201 : vector<32x32xf32>
    %203 = arith.addf %175, %202 : vector<32x32xf32>
    %204 = vector.extract_strided_slice %51 {offsets = [16, 0], sizes = [32, 32], strides = [1, 1]} : vector<128x32xf32> to vector<32x32xf32>
    %205 = vector.extract_strided_slice %94 {offsets = [15, 0], sizes = [1, 32], strides = [1, 1]} : vector<31x32xf32> to vector<1x32xf32>
    %206 = vector.shape_cast %205 : vector<1x32xf32> to vector<32xf32>
    %207 = vector.shape_cast %206 : vector<32xf32> to vector<1x32xf32>
    %208 = vector.broadcast %207 : vector<1x32xf32> to vector<32x32xf32>
    %209 = arith.mulf %204, %208 : vector<32x32xf32>
    %210 = arith.addf %182, %209 : vector<32x32xf32>
    %211 = vector.extract_strided_slice %57 {offsets = [16, 0], sizes = [32, 32], strides = [1, 1]} : vector<128x32xf32> to vector<32x32xf32>
    %212 = vector.extract_strided_slice %94 {offsets = [16, 0], sizes = [1, 32], strides = [1, 1]} : vector<31x32xf32> to vector<1x32xf32>
    %213 = vector.shape_cast %212 : vector<1x32xf32> to vector<32xf32>
    %214 = vector.shape_cast %213 : vector<32xf32> to vector<1x32xf32>
    %215 = vector.broadcast %214 : vector<1x32xf32> to vector<32x32xf32>
    %216 = arith.mulf %211, %215 : vector<32x32xf32>
    %217 = arith.addf %189, %216 : vector<32x32xf32>
    %218 = vector.extract_strided_slice %63 {offsets = [16, 0], sizes = [32, 32], strides = [1, 1]} : vector<128x32xf32> to vector<32x32xf32>
    %219 = vector.extract_strided_slice %94 {offsets = [17, 0], sizes = [1, 32], strides = [1, 1]} : vector<31x32xf32> to vector<1x32xf32>
    %220 = vector.shape_cast %219 : vector<1x32xf32> to vector<32xf32>
    %221 = vector.shape_cast %220 : vector<32xf32> to vector<1x32xf32>
    %222 = vector.broadcast %221 : vector<1x32xf32> to vector<32x32xf32>
    %223 = arith.mulf %218, %222 : vector<32x32xf32>
    %224 = arith.addf %196, %223 : vector<32x32xf32>
    %225 = vector.extract_strided_slice %69 {offsets = [16, 0], sizes = [32, 32], strides = [1, 1]} : vector<128x32xf32> to vector<32x32xf32>
    %226 = vector.extract_strided_slice %94 {offsets = [18, 0], sizes = [1, 32], strides = [1, 1]} : vector<31x32xf32> to vector<1x32xf32>
    %227 = vector.shape_cast %226 : vector<1x32xf32> to vector<32xf32>
    %228 = vector.shape_cast %227 : vector<32xf32> to vector<1x32xf32>
    %229 = vector.broadcast %228 : vector<1x32xf32> to vector<32x32xf32>
    %230 = arith.mulf %225, %229 : vector<32x32xf32>
    %231 = arith.addf %203, %230 : vector<32x32xf32>
    %232 = vector.extract_strided_slice %75 {offsets = [16, 0], sizes = [32, 32], strides = [1, 1]} : vector<128x32xf32> to vector<32x32xf32>
    %233 = vector.extract_strided_slice %94 {offsets = [19, 0], sizes = [1, 32], strides = [1, 1]} : vector<31x32xf32> to vector<1x32xf32>
    %234 = vector.shape_cast %233 : vector<1x32xf32> to vector<32xf32>
    %235 = vector.shape_cast %234 : vector<32xf32> to vector<1x32xf32>
    %236 = vector.broadcast %235 : vector<1x32xf32> to vector<32x32xf32>
    %237 = arith.mulf %232, %236 : vector<32x32xf32>
    %238 = arith.addf %210, %237 : vector<32x32xf32>
    %239 = vector.extract_strided_slice %81 {offsets = [16, 0], sizes = [32, 32], strides = [1, 1]} : vector<128x32xf32> to vector<32x32xf32>
    %240 = vector.extract_strided_slice %94 {offsets = [20, 0], sizes = [1, 32], strides = [1, 1]} : vector<31x32xf32> to vector<1x32xf32>
    %241 = vector.shape_cast %240 : vector<1x32xf32> to vector<32xf32>
    %242 = vector.shape_cast %241 : vector<32xf32> to vector<1x32xf32>
    %243 = vector.broadcast %242 : vector<1x32xf32> to vector<32x32xf32>
    %244 = arith.mulf %239, %243 : vector<32x32xf32>
    %245 = arith.addf %217, %244 : vector<32x32xf32>
    %246 = vector.extract_strided_slice %87 {offsets = [16, 0], sizes = [32, 32], strides = [1, 1]} : vector<128x32xf32> to vector<32x32xf32>
    %247 = vector.extract_strided_slice %94 {offsets = [21, 0], sizes = [1, 32], strides = [1, 1]} : vector<31x32xf32> to vector<1x32xf32>
    %248 = vector.shape_cast %247 : vector<1x32xf32> to vector<32xf32>
    %249 = vector.shape_cast %248 : vector<32xf32> to vector<1x32xf32>
    %250 = vector.broadcast %249 : vector<1x32xf32> to vector<32x32xf32>
    %251 = arith.mulf %246, %250 : vector<32x32xf32>
    %252 = arith.addf %224, %251 : vector<32x32xf32>
    %253 = vector.extract_strided_slice %93 {offsets = [16, 0], sizes = [32, 32], strides = [1, 1]} : vector<128x32xf32> to vector<32x32xf32>
    %254 = vector.extract_strided_slice %94 {offsets = [22, 0], sizes = [1, 32], strides = [1, 1]} : vector<31x32xf32> to vector<1x32xf32>
    %255 = vector.shape_cast %254 : vector<1x32xf32> to vector<32xf32>
    %256 = vector.shape_cast %255 : vector<32xf32> to vector<1x32xf32>
    %257 = vector.broadcast %256 : vector<1x32xf32> to vector<32x32xf32>
    %258 = arith.mulf %253, %257 : vector<32x32xf32>
    %259 = arith.addf %231, %258 : vector<32x32xf32>
    %260 = vector.extract_strided_slice %51 {offsets = [24, 0], sizes = [32, 32], strides = [1, 1]} : vector<128x32xf32> to vector<32x32xf32>
    %261 = vector.extract_strided_slice %94 {offsets = [23, 0], sizes = [1, 32], strides = [1, 1]} : vector<31x32xf32> to vector<1x32xf32>
    %262 = vector.shape_cast %261 : vector<1x32xf32> to vector<32xf32>
    %263 = vector.shape_cast %262 : vector<32xf32> to vector<1x32xf32>
    %264 = vector.broadcast %263 : vector<1x32xf32> to vector<32x32xf32>
    %265 = arith.mulf %260, %264 : vector<32x32xf32>
    %266 = arith.addf %238, %265 : vector<32x32xf32>
    %267 = vector.extract_strided_slice %57 {offsets = [24, 0], sizes = [32, 32], strides = [1, 1]} : vector<128x32xf32> to vector<32x32xf32>
    %268 = vector.extract_strided_slice %94 {offsets = [24, 0], sizes = [1, 32], strides = [1, 1]} : vector<31x32xf32> to vector<1x32xf32>
    %269 = vector.shape_cast %268 : vector<1x32xf32> to vector<32xf32>
    %270 = vector.shape_cast %269 : vector<32xf32> to vector<1x32xf32>
    %271 = vector.broadcast %270 : vector<1x32xf32> to vector<32x32xf32>
    %272 = arith.mulf %267, %271 : vector<32x32xf32>
    %273 = arith.addf %245, %272 : vector<32x32xf32>
    %274 = vector.extract_strided_slice %63 {offsets = [24, 0], sizes = [32, 32], strides = [1, 1]} : vector<128x32xf32> to vector<32x32xf32>
    %275 = vector.extract_strided_slice %94 {offsets = [25, 0], sizes = [1, 32], strides = [1, 1]} : vector<31x32xf32> to vector<1x32xf32>
    %276 = vector.shape_cast %275 : vector<1x32xf32> to vector<32xf32>
    %277 = vector.shape_cast %276 : vector<32xf32> to vector<1x32xf32>
    %278 = vector.broadcast %277 : vector<1x32xf32> to vector<32x32xf32>
    %279 = arith.mulf %274, %278 : vector<32x32xf32>
    %280 = arith.addf %252, %279 : vector<32x32xf32>
    %281 = vector.extract_strided_slice %69 {offsets = [24, 0], sizes = [32, 32], strides = [1, 1]} : vector<128x32xf32> to vector<32x32xf32>
    %282 = vector.extract_strided_slice %94 {offsets = [26, 0], sizes = [1, 32], strides = [1, 1]} : vector<31x32xf32> to vector<1x32xf32>
    %283 = vector.shape_cast %282 : vector<1x32xf32> to vector<32xf32>
    %284 = vector.shape_cast %283 : vector<32xf32> to vector<1x32xf32>
    %285 = vector.broadcast %284 : vector<1x32xf32> to vector<32x32xf32>
    %286 = arith.mulf %281, %285 : vector<32x32xf32>
    %287 = arith.addf %259, %286 : vector<32x32xf32>
    %288 = vector.extract_strided_slice %75 {offsets = [24, 0], sizes = [32, 32], strides = [1, 1]} : vector<128x32xf32> to vector<32x32xf32>
    %289 = vector.extract_strided_slice %94 {offsets = [27, 0], sizes = [1, 32], strides = [1, 1]} : vector<31x32xf32> to vector<1x32xf32>
    %290 = vector.shape_cast %289 : vector<1x32xf32> to vector<32xf32>
    %291 = vector.shape_cast %290 : vector<32xf32> to vector<1x32xf32>
    %292 = vector.broadcast %291 : vector<1x32xf32> to vector<32x32xf32>
    %293 = arith.mulf %288, %292 : vector<32x32xf32>
    %294 = arith.addf %266, %293 : vector<32x32xf32>
    %295 = vector.extract_strided_slice %81 {offsets = [24, 0], sizes = [32, 32], strides = [1, 1]} : vector<128x32xf32> to vector<32x32xf32>
    %296 = vector.extract_strided_slice %94 {offsets = [28, 0], sizes = [1, 32], strides = [1, 1]} : vector<31x32xf32> to vector<1x32xf32>
    %297 = vector.shape_cast %296 : vector<1x32xf32> to vector<32xf32>
    %298 = vector.shape_cast %297 : vector<32xf32> to vector<1x32xf32>
    %299 = vector.broadcast %298 : vector<1x32xf32> to vector<32x32xf32>
    %300 = arith.mulf %295, %299 : vector<32x32xf32>
    %301 = arith.addf %273, %300 : vector<32x32xf32>
    %302 = vector.extract_strided_slice %87 {offsets = [24, 0], sizes = [32, 32], strides = [1, 1]} : vector<128x32xf32> to vector<32x32xf32>
    %303 = vector.extract_strided_slice %94 {offsets = [29, 0], sizes = [1, 32], strides = [1, 1]} : vector<31x32xf32> to vector<1x32xf32>
    %304 = vector.shape_cast %303 : vector<1x32xf32> to vector<32xf32>
    %305 = vector.shape_cast %304 : vector<32xf32> to vector<1x32xf32>
    %306 = vector.broadcast %305 : vector<1x32xf32> to vector<32x32xf32>
    %307 = arith.mulf %302, %306 : vector<32x32xf32>
    %308 = arith.addf %280, %307 : vector<32x32xf32>
    %309 = vector.extract_strided_slice %93 {offsets = [24, 0], sizes = [32, 32], strides = [1, 1]} : vector<128x32xf32> to vector<32x32xf32>
    %310 = vector.extract_strided_slice %94 {offsets = [30, 0], sizes = [1, 32], strides = [1, 1]} : vector<31x32xf32> to vector<1x32xf32>
    %311 = vector.shape_cast %310 : vector<1x32xf32> to vector<32xf32>
    %312 = vector.shape_cast %311 : vector<32xf32> to vector<1x32xf32>
    %313 = vector.broadcast %312 : vector<1x32xf32> to vector<32x32xf32>
    %314 = arith.mulf %309, %313 : vector<32x32xf32>
    %315 = arith.addf %287, %314 : vector<32x32xf32>
    %316 = arith.addf %301, %308 : vector<32x32xf32>
    %317 = arith.addf %315, %294 : vector<32x32xf32>
    %318 = arith.addf %316, %317 : vector<32x32xf32>
    %cst_44 = arith.constant 0.000000e+00 : f32
    %319 = vector.broadcast %cst_44 : f32 to vector<32x32xf32>
    %cst_45 = arith.constant 0.000000e+00 : f32
    %320 = vector.broadcast %cst_45 : f32 to vector<32x32xf32>
    %cst_46 = arith.constant 0.000000e+00 : f32
    %321 = vector.broadcast %cst_46 : f32 to vector<32x32xf32>
    %cst_47 = arith.constant 0.000000e+00 : f32
    %322 = vector.broadcast %cst_47 : f32 to vector<32x32xf32>
    %323 = vector.extract_strided_slice %57 {offsets = [64, 0], sizes = [32, 32], strides = [1, 1]} : vector<128x32xf32> to vector<32x32xf32>
    %324 = vector.extract_strided_slice %94 {offsets = [0, 0], sizes = [1, 32], strides = [1, 1]} : vector<31x32xf32> to vector<1x32xf32>
    %325 = vector.shape_cast %324 : vector<1x32xf32> to vector<32xf32>
    %326 = vector.shape_cast %325 : vector<32xf32> to vector<1x32xf32>
    %327 = vector.broadcast %326 : vector<1x32xf32> to vector<32x32xf32>
    %328 = arith.mulf %323, %327 : vector<32x32xf32>
    %329 = arith.addf %319, %328 : vector<32x32xf32>
    %330 = vector.extract_strided_slice %63 {offsets = [64, 0], sizes = [32, 32], strides = [1, 1]} : vector<128x32xf32> to vector<32x32xf32>
    %331 = vector.extract_strided_slice %94 {offsets = [1, 0], sizes = [1, 32], strides = [1, 1]} : vector<31x32xf32> to vector<1x32xf32>
    %332 = vector.shape_cast %331 : vector<1x32xf32> to vector<32xf32>
    %333 = vector.shape_cast %332 : vector<32xf32> to vector<1x32xf32>
    %334 = vector.broadcast %333 : vector<1x32xf32> to vector<32x32xf32>
    %335 = arith.mulf %330, %334 : vector<32x32xf32>
    %336 = arith.addf %320, %335 : vector<32x32xf32>
    %337 = vector.extract_strided_slice %69 {offsets = [64, 0], sizes = [32, 32], strides = [1, 1]} : vector<128x32xf32> to vector<32x32xf32>
    %338 = vector.extract_strided_slice %94 {offsets = [2, 0], sizes = [1, 32], strides = [1, 1]} : vector<31x32xf32> to vector<1x32xf32>
    %339 = vector.shape_cast %338 : vector<1x32xf32> to vector<32xf32>
    %340 = vector.shape_cast %339 : vector<32xf32> to vector<1x32xf32>
    %341 = vector.broadcast %340 : vector<1x32xf32> to vector<32x32xf32>
    %342 = arith.mulf %337, %341 : vector<32x32xf32>
    %343 = arith.addf %321, %342 : vector<32x32xf32>
    %344 = vector.extract_strided_slice %75 {offsets = [64, 0], sizes = [32, 32], strides = [1, 1]} : vector<128x32xf32> to vector<32x32xf32>
    %345 = vector.extract_strided_slice %94 {offsets = [3, 0], sizes = [1, 32], strides = [1, 1]} : vector<31x32xf32> to vector<1x32xf32>
    %346 = vector.shape_cast %345 : vector<1x32xf32> to vector<32xf32>
    %347 = vector.shape_cast %346 : vector<32xf32> to vector<1x32xf32>
    %348 = vector.broadcast %347 : vector<1x32xf32> to vector<32x32xf32>
    %349 = arith.mulf %344, %348 : vector<32x32xf32>
    %350 = arith.addf %322, %349 : vector<32x32xf32>
    %351 = vector.extract_strided_slice %81 {offsets = [64, 0], sizes = [32, 32], strides = [1, 1]} : vector<128x32xf32> to vector<32x32xf32>
    %352 = vector.extract_strided_slice %94 {offsets = [4, 0], sizes = [1, 32], strides = [1, 1]} : vector<31x32xf32> to vector<1x32xf32>
    %353 = vector.shape_cast %352 : vector<1x32xf32> to vector<32xf32>
    %354 = vector.shape_cast %353 : vector<32xf32> to vector<1x32xf32>
    %355 = vector.broadcast %354 : vector<1x32xf32> to vector<32x32xf32>
    %356 = arith.mulf %351, %355 : vector<32x32xf32>
    %357 = arith.addf %329, %356 : vector<32x32xf32>
    %358 = vector.extract_strided_slice %87 {offsets = [64, 0], sizes = [32, 32], strides = [1, 1]} : vector<128x32xf32> to vector<32x32xf32>
    %359 = vector.extract_strided_slice %94 {offsets = [5, 0], sizes = [1, 32], strides = [1, 1]} : vector<31x32xf32> to vector<1x32xf32>
    %360 = vector.shape_cast %359 : vector<1x32xf32> to vector<32xf32>
    %361 = vector.shape_cast %360 : vector<32xf32> to vector<1x32xf32>
    %362 = vector.broadcast %361 : vector<1x32xf32> to vector<32x32xf32>
    %363 = arith.mulf %358, %362 : vector<32x32xf32>
    %364 = arith.addf %336, %363 : vector<32x32xf32>
    %365 = vector.extract_strided_slice %93 {offsets = [64, 0], sizes = [32, 32], strides = [1, 1]} : vector<128x32xf32> to vector<32x32xf32>
    %366 = vector.extract_strided_slice %94 {offsets = [6, 0], sizes = [1, 32], strides = [1, 1]} : vector<31x32xf32> to vector<1x32xf32>
    %367 = vector.shape_cast %366 : vector<1x32xf32> to vector<32xf32>
    %368 = vector.shape_cast %367 : vector<32xf32> to vector<1x32xf32>
    %369 = vector.broadcast %368 : vector<1x32xf32> to vector<32x32xf32>
    %370 = arith.mulf %365, %369 : vector<32x32xf32>
    %371 = arith.addf %343, %370 : vector<32x32xf32>
    %372 = vector.extract_strided_slice %51 {offsets = [72, 0], sizes = [32, 32], strides = [1, 1]} : vector<128x32xf32> to vector<32x32xf32>
    %373 = vector.extract_strided_slice %94 {offsets = [7, 0], sizes = [1, 32], strides = [1, 1]} : vector<31x32xf32> to vector<1x32xf32>
    %374 = vector.shape_cast %373 : vector<1x32xf32> to vector<32xf32>
    %375 = vector.shape_cast %374 : vector<32xf32> to vector<1x32xf32>
    %376 = vector.broadcast %375 : vector<1x32xf32> to vector<32x32xf32>
    %377 = arith.mulf %372, %376 : vector<32x32xf32>
    %378 = arith.addf %350, %377 : vector<32x32xf32>
    %379 = vector.extract_strided_slice %57 {offsets = [72, 0], sizes = [32, 32], strides = [1, 1]} : vector<128x32xf32> to vector<32x32xf32>
    %380 = vector.extract_strided_slice %94 {offsets = [8, 0], sizes = [1, 32], strides = [1, 1]} : vector<31x32xf32> to vector<1x32xf32>
    %381 = vector.shape_cast %380 : vector<1x32xf32> to vector<32xf32>
    %382 = vector.shape_cast %381 : vector<32xf32> to vector<1x32xf32>
    %383 = vector.broadcast %382 : vector<1x32xf32> to vector<32x32xf32>
    %384 = arith.mulf %379, %383 : vector<32x32xf32>
    %385 = arith.addf %357, %384 : vector<32x32xf32>
    %386 = vector.extract_strided_slice %63 {offsets = [72, 0], sizes = [32, 32], strides = [1, 1]} : vector<128x32xf32> to vector<32x32xf32>
    %387 = vector.extract_strided_slice %94 {offsets = [9, 0], sizes = [1, 32], strides = [1, 1]} : vector<31x32xf32> to vector<1x32xf32>
    %388 = vector.shape_cast %387 : vector<1x32xf32> to vector<32xf32>
    %389 = vector.shape_cast %388 : vector<32xf32> to vector<1x32xf32>
    %390 = vector.broadcast %389 : vector<1x32xf32> to vector<32x32xf32>
    %391 = arith.mulf %386, %390 : vector<32x32xf32>
    %392 = arith.addf %364, %391 : vector<32x32xf32>
    %393 = vector.extract_strided_slice %69 {offsets = [72, 0], sizes = [32, 32], strides = [1, 1]} : vector<128x32xf32> to vector<32x32xf32>
    %394 = vector.extract_strided_slice %94 {offsets = [10, 0], sizes = [1, 32], strides = [1, 1]} : vector<31x32xf32> to vector<1x32xf32>
    %395 = vector.shape_cast %394 : vector<1x32xf32> to vector<32xf32>
    %396 = vector.shape_cast %395 : vector<32xf32> to vector<1x32xf32>
    %397 = vector.broadcast %396 : vector<1x32xf32> to vector<32x32xf32>
    %398 = arith.mulf %393, %397 : vector<32x32xf32>
    %399 = arith.addf %371, %398 : vector<32x32xf32>
    %400 = vector.extract_strided_slice %75 {offsets = [72, 0], sizes = [32, 32], strides = [1, 1]} : vector<128x32xf32> to vector<32x32xf32>
    %401 = vector.extract_strided_slice %94 {offsets = [11, 0], sizes = [1, 32], strides = [1, 1]} : vector<31x32xf32> to vector<1x32xf32>
    %402 = vector.shape_cast %401 : vector<1x32xf32> to vector<32xf32>
    %403 = vector.shape_cast %402 : vector<32xf32> to vector<1x32xf32>
    %404 = vector.broadcast %403 : vector<1x32xf32> to vector<32x32xf32>
    %405 = arith.mulf %400, %404 : vector<32x32xf32>
    %406 = arith.addf %378, %405 : vector<32x32xf32>
    %407 = vector.extract_strided_slice %81 {offsets = [72, 0], sizes = [32, 32], strides = [1, 1]} : vector<128x32xf32> to vector<32x32xf32>
    %408 = vector.extract_strided_slice %94 {offsets = [12, 0], sizes = [1, 32], strides = [1, 1]} : vector<31x32xf32> to vector<1x32xf32>
    %409 = vector.shape_cast %408 : vector<1x32xf32> to vector<32xf32>
    %410 = vector.shape_cast %409 : vector<32xf32> to vector<1x32xf32>
    %411 = vector.broadcast %410 : vector<1x32xf32> to vector<32x32xf32>
    %412 = arith.mulf %407, %411 : vector<32x32xf32>
    %413 = arith.addf %385, %412 : vector<32x32xf32>
    %414 = vector.extract_strided_slice %87 {offsets = [72, 0], sizes = [32, 32], strides = [1, 1]} : vector<128x32xf32> to vector<32x32xf32>
    %415 = vector.extract_strided_slice %94 {offsets = [13, 0], sizes = [1, 32], strides = [1, 1]} : vector<31x32xf32> to vector<1x32xf32>
    %416 = vector.shape_cast %415 : vector<1x32xf32> to vector<32xf32>
    %417 = vector.shape_cast %416 : vector<32xf32> to vector<1x32xf32>
    %418 = vector.broadcast %417 : vector<1x32xf32> to vector<32x32xf32>
    %419 = arith.mulf %414, %418 : vector<32x32xf32>
    %420 = arith.addf %392, %419 : vector<32x32xf32>
    %421 = vector.extract_strided_slice %93 {offsets = [72, 0], sizes = [32, 32], strides = [1, 1]} : vector<128x32xf32> to vector<32x32xf32>
    %422 = vector.extract_strided_slice %94 {offsets = [14, 0], sizes = [1, 32], strides = [1, 1]} : vector<31x32xf32> to vector<1x32xf32>
    %423 = vector.shape_cast %422 : vector<1x32xf32> to vector<32xf32>
    %424 = vector.shape_cast %423 : vector<32xf32> to vector<1x32xf32>
    %425 = vector.broadcast %424 : vector<1x32xf32> to vector<32x32xf32>
    %426 = arith.mulf %421, %425 : vector<32x32xf32>
    %427 = arith.addf %399, %426 : vector<32x32xf32>
    %428 = vector.extract_strided_slice %51 {offsets = [80, 0], sizes = [32, 32], strides = [1, 1]} : vector<128x32xf32> to vector<32x32xf32>
    %429 = vector.extract_strided_slice %94 {offsets = [15, 0], sizes = [1, 32], strides = [1, 1]} : vector<31x32xf32> to vector<1x32xf32>
    %430 = vector.shape_cast %429 : vector<1x32xf32> to vector<32xf32>
    %431 = vector.shape_cast %430 : vector<32xf32> to vector<1x32xf32>
    %432 = vector.broadcast %431 : vector<1x32xf32> to vector<32x32xf32>
    %433 = arith.mulf %428, %432 : vector<32x32xf32>
    %434 = arith.addf %406, %433 : vector<32x32xf32>
    %435 = vector.extract_strided_slice %57 {offsets = [80, 0], sizes = [32, 32], strides = [1, 1]} : vector<128x32xf32> to vector<32x32xf32>
    %436 = vector.extract_strided_slice %94 {offsets = [16, 0], sizes = [1, 32], strides = [1, 1]} : vector<31x32xf32> to vector<1x32xf32>
    %437 = vector.shape_cast %436 : vector<1x32xf32> to vector<32xf32>
    %438 = vector.shape_cast %437 : vector<32xf32> to vector<1x32xf32>
    %439 = vector.broadcast %438 : vector<1x32xf32> to vector<32x32xf32>
    %440 = arith.mulf %435, %439 : vector<32x32xf32>
    %441 = arith.addf %413, %440 : vector<32x32xf32>
    %442 = vector.extract_strided_slice %63 {offsets = [80, 0], sizes = [32, 32], strides = [1, 1]} : vector<128x32xf32> to vector<32x32xf32>
    %443 = vector.extract_strided_slice %94 {offsets = [17, 0], sizes = [1, 32], strides = [1, 1]} : vector<31x32xf32> to vector<1x32xf32>
    %444 = vector.shape_cast %443 : vector<1x32xf32> to vector<32xf32>
    %445 = vector.shape_cast %444 : vector<32xf32> to vector<1x32xf32>
    %446 = vector.broadcast %445 : vector<1x32xf32> to vector<32x32xf32>
    %447 = arith.mulf %442, %446 : vector<32x32xf32>
    %448 = arith.addf %420, %447 : vector<32x32xf32>
    %449 = vector.extract_strided_slice %69 {offsets = [80, 0], sizes = [32, 32], strides = [1, 1]} : vector<128x32xf32> to vector<32x32xf32>
    %450 = vector.extract_strided_slice %94 {offsets = [18, 0], sizes = [1, 32], strides = [1, 1]} : vector<31x32xf32> to vector<1x32xf32>
    %451 = vector.shape_cast %450 : vector<1x32xf32> to vector<32xf32>
    %452 = vector.shape_cast %451 : vector<32xf32> to vector<1x32xf32>
    %453 = vector.broadcast %452 : vector<1x32xf32> to vector<32x32xf32>
    %454 = arith.mulf %449, %453 : vector<32x32xf32>
    %455 = arith.addf %427, %454 : vector<32x32xf32>
    %456 = vector.extract_strided_slice %75 {offsets = [80, 0], sizes = [32, 32], strides = [1, 1]} : vector<128x32xf32> to vector<32x32xf32>
    %457 = vector.extract_strided_slice %94 {offsets = [19, 0], sizes = [1, 32], strides = [1, 1]} : vector<31x32xf32> to vector<1x32xf32>
    %458 = vector.shape_cast %457 : vector<1x32xf32> to vector<32xf32>
    %459 = vector.shape_cast %458 : vector<32xf32> to vector<1x32xf32>
    %460 = vector.broadcast %459 : vector<1x32xf32> to vector<32x32xf32>
    %461 = arith.mulf %456, %460 : vector<32x32xf32>
    %462 = arith.addf %434, %461 : vector<32x32xf32>
    %463 = vector.extract_strided_slice %81 {offsets = [80, 0], sizes = [32, 32], strides = [1, 1]} : vector<128x32xf32> to vector<32x32xf32>
    %464 = vector.extract_strided_slice %94 {offsets = [20, 0], sizes = [1, 32], strides = [1, 1]} : vector<31x32xf32> to vector<1x32xf32>
    %465 = vector.shape_cast %464 : vector<1x32xf32> to vector<32xf32>
    %466 = vector.shape_cast %465 : vector<32xf32> to vector<1x32xf32>
    %467 = vector.broadcast %466 : vector<1x32xf32> to vector<32x32xf32>
    %468 = arith.mulf %463, %467 : vector<32x32xf32>
    %469 = arith.addf %441, %468 : vector<32x32xf32>
    %470 = vector.extract_strided_slice %87 {offsets = [80, 0], sizes = [32, 32], strides = [1, 1]} : vector<128x32xf32> to vector<32x32xf32>
    %471 = vector.extract_strided_slice %94 {offsets = [21, 0], sizes = [1, 32], strides = [1, 1]} : vector<31x32xf32> to vector<1x32xf32>
    %472 = vector.shape_cast %471 : vector<1x32xf32> to vector<32xf32>
    %473 = vector.shape_cast %472 : vector<32xf32> to vector<1x32xf32>
    %474 = vector.broadcast %473 : vector<1x32xf32> to vector<32x32xf32>
    %475 = arith.mulf %470, %474 : vector<32x32xf32>
    %476 = arith.addf %448, %475 : vector<32x32xf32>
    %477 = vector.extract_strided_slice %93 {offsets = [80, 0], sizes = [32, 32], strides = [1, 1]} : vector<128x32xf32> to vector<32x32xf32>
    %478 = vector.extract_strided_slice %94 {offsets = [22, 0], sizes = [1, 32], strides = [1, 1]} : vector<31x32xf32> to vector<1x32xf32>
    %479 = vector.shape_cast %478 : vector<1x32xf32> to vector<32xf32>
    %480 = vector.shape_cast %479 : vector<32xf32> to vector<1x32xf32>
    %481 = vector.broadcast %480 : vector<1x32xf32> to vector<32x32xf32>
    %482 = arith.mulf %477, %481 : vector<32x32xf32>
    %483 = arith.addf %455, %482 : vector<32x32xf32>
    %484 = vector.extract_strided_slice %51 {offsets = [88, 0], sizes = [32, 32], strides = [1, 1]} : vector<128x32xf32> to vector<32x32xf32>
    %485 = vector.extract_strided_slice %94 {offsets = [23, 0], sizes = [1, 32], strides = [1, 1]} : vector<31x32xf32> to vector<1x32xf32>
    %486 = vector.shape_cast %485 : vector<1x32xf32> to vector<32xf32>
    %487 = vector.shape_cast %486 : vector<32xf32> to vector<1x32xf32>
    %488 = vector.broadcast %487 : vector<1x32xf32> to vector<32x32xf32>
    %489 = arith.mulf %484, %488 : vector<32x32xf32>
    %490 = arith.addf %462, %489 : vector<32x32xf32>
    %491 = vector.extract_strided_slice %57 {offsets = [88, 0], sizes = [32, 32], strides = [1, 1]} : vector<128x32xf32> to vector<32x32xf32>
    %492 = vector.extract_strided_slice %94 {offsets = [24, 0], sizes = [1, 32], strides = [1, 1]} : vector<31x32xf32> to vector<1x32xf32>
    %493 = vector.shape_cast %492 : vector<1x32xf32> to vector<32xf32>
    %494 = vector.shape_cast %493 : vector<32xf32> to vector<1x32xf32>
    %495 = vector.broadcast %494 : vector<1x32xf32> to vector<32x32xf32>
    %496 = arith.mulf %491, %495 : vector<32x32xf32>
    %497 = arith.addf %469, %496 : vector<32x32xf32>
    %498 = vector.extract_strided_slice %63 {offsets = [88, 0], sizes = [32, 32], strides = [1, 1]} : vector<128x32xf32> to vector<32x32xf32>
    %499 = vector.extract_strided_slice %94 {offsets = [25, 0], sizes = [1, 32], strides = [1, 1]} : vector<31x32xf32> to vector<1x32xf32>
    %500 = vector.shape_cast %499 : vector<1x32xf32> to vector<32xf32>
    %501 = vector.shape_cast %500 : vector<32xf32> to vector<1x32xf32>
    %502 = vector.broadcast %501 : vector<1x32xf32> to vector<32x32xf32>
    %503 = arith.mulf %498, %502 : vector<32x32xf32>
    %504 = arith.addf %476, %503 : vector<32x32xf32>
    %505 = vector.extract_strided_slice %69 {offsets = [88, 0], sizes = [32, 32], strides = [1, 1]} : vector<128x32xf32> to vector<32x32xf32>
    %506 = vector.extract_strided_slice %94 {offsets = [26, 0], sizes = [1, 32], strides = [1, 1]} : vector<31x32xf32> to vector<1x32xf32>
    %507 = vector.shape_cast %506 : vector<1x32xf32> to vector<32xf32>
    %508 = vector.shape_cast %507 : vector<32xf32> to vector<1x32xf32>
    %509 = vector.broadcast %508 : vector<1x32xf32> to vector<32x32xf32>
    %510 = arith.mulf %505, %509 : vector<32x32xf32>
    %511 = arith.addf %483, %510 : vector<32x32xf32>
    %512 = vector.extract_strided_slice %75 {offsets = [88, 0], sizes = [32, 32], strides = [1, 1]} : vector<128x32xf32> to vector<32x32xf32>
    %513 = vector.extract_strided_slice %94 {offsets = [27, 0], sizes = [1, 32], strides = [1, 1]} : vector<31x32xf32> to vector<1x32xf32>
    %514 = vector.shape_cast %513 : vector<1x32xf32> to vector<32xf32>
    %515 = vector.shape_cast %514 : vector<32xf32> to vector<1x32xf32>
    %516 = vector.broadcast %515 : vector<1x32xf32> to vector<32x32xf32>
    %517 = arith.mulf %512, %516 : vector<32x32xf32>
    %518 = arith.addf %490, %517 : vector<32x32xf32>
    %519 = vector.extract_strided_slice %81 {offsets = [88, 0], sizes = [32, 32], strides = [1, 1]} : vector<128x32xf32> to vector<32x32xf32>
    %520 = vector.extract_strided_slice %94 {offsets = [28, 0], sizes = [1, 32], strides = [1, 1]} : vector<31x32xf32> to vector<1x32xf32>
    %521 = vector.shape_cast %520 : vector<1x32xf32> to vector<32xf32>
    %522 = vector.shape_cast %521 : vector<32xf32> to vector<1x32xf32>
    %523 = vector.broadcast %522 : vector<1x32xf32> to vector<32x32xf32>
    %524 = arith.mulf %519, %523 : vector<32x32xf32>
    %525 = arith.addf %497, %524 : vector<32x32xf32>
    %526 = vector.extract_strided_slice %87 {offsets = [88, 0], sizes = [32, 32], strides = [1, 1]} : vector<128x32xf32> to vector<32x32xf32>
    %527 = vector.extract_strided_slice %94 {offsets = [29, 0], sizes = [1, 32], strides = [1, 1]} : vector<31x32xf32> to vector<1x32xf32>
    %528 = vector.shape_cast %527 : vector<1x32xf32> to vector<32xf32>
    %529 = vector.shape_cast %528 : vector<32xf32> to vector<1x32xf32>
    %530 = vector.broadcast %529 : vector<1x32xf32> to vector<32x32xf32>
    %531 = arith.mulf %526, %530 : vector<32x32xf32>
    %532 = arith.addf %504, %531 : vector<32x32xf32>
    %533 = vector.extract_strided_slice %93 {offsets = [88, 0], sizes = [32, 32], strides = [1, 1]} : vector<128x32xf32> to vector<32x32xf32>
    %534 = vector.extract_strided_slice %94 {offsets = [30, 0], sizes = [1, 32], strides = [1, 1]} : vector<31x32xf32> to vector<1x32xf32>
    %535 = vector.shape_cast %534 : vector<1x32xf32> to vector<32xf32>
    %536 = vector.shape_cast %535 : vector<32xf32> to vector<1x32xf32>
    %537 = vector.broadcast %536 : vector<1x32xf32> to vector<32x32xf32>
    %538 = arith.mulf %533, %537 : vector<32x32xf32>
    %539 = arith.addf %511, %538 : vector<32x32xf32>
    %540 = arith.addf %525, %532 : vector<32x32xf32>
    %541 = arith.addf %539, %518 : vector<32x32xf32>
    %542 = arith.addf %540, %541 : vector<32x32xf32>
    %543 = tpu.concatenate %318, %542 in 0 : vector<32x32xf32>, vector<32x32xf32> -> vector<64x32xf32>
    %544 = vector.shape_cast %9 : vector<32xf32> to vector<1x32xf32>
    %545 = vector.broadcast %544 : vector<1x32xf32> to vector<64x32xf32>
    %546 = arith.addf %543, %545 : vector<64x32xf32>
    %cst_48 = arith.constant 0.000000e+00 : f32
    %547 = vector.broadcast %cst_48 : f32 to vector<64x32xf32>
    %548 = arith.cmpf oge, %546, %547 : vector<64x32xf32>
    %549 = vector.shape_cast %11 : vector<32xf32> to vector<1x32xf32>
    %550 = vector.broadcast %549 : vector<1x32xf32> to vector<64x32xf32>
    %551 = arith.mulf %550, %546 : vector<64x32xf32>
    %552 = arith.select %548, %546, %551 : vector<64x32xi1>, vector<64x32xf32>
    %c0_49 = arith.constant 0 : index
    %c0_50 = arith.constant 0 : index
    %553 = vector.load %arg3[%c0_49, %c0_50] : memref<32x16xf32, #tpu.memory_space<vmem>>, vector<32x16xf32>
    %cst_51 = arith.constant dense<0.000000e+00> : vector<64x16xf32>
    %554 = tpu.matmul %552, %553, %cst_51 {dimension_numbers = #tpu.dot_dimension_numbers<[1], [0], [0], [1], [0, 0, 1, 1], [], []>} : vector<64x32xf32>, vector<32x16xf32>, vector<64x16xf32> -> vector<64x16xf32>
    %555 = vector.shape_cast %13 : vector<16xf32> to vector<1x16xf32>
    %556 = vector.broadcast %555 : vector<1x16xf32> to vector<64x16xf32>
    %557 = arith.addf %554, %556 : vector<64x16xf32>
    %558 = vector.extract_strided_slice %557 {offsets = [0, 0], sizes = [32, 16], strides = [1, 1]} : vector<64x16xf32> to vector<32x16xf32>
    %c0_52 = arith.constant 0 : index
    %c0_53 = arith.constant 0 : index
    %c0_54 = arith.constant 0 : index
    %559 = vector.load %arg5[%c0_52, %c0_53, %c0_54] : memref<2x32x16xf32, #tpu.memory_space<vmem>>, vector<1x32x16xf32>
    %560 = vector.shape_cast %559 : vector<1x32x16xf32> to vector<32x16xf32>
    %561 = vector.shape_cast %558 : vector<32x16xf32> to vector<1x32x16xf32>
    tpu.vector_store %arg5[%c0_52, %c0_53, %c0_54], %561 {strides = array<i32>} : memref<2x32x16xf32, #tpu.memory_space<vmem>>, vector<1x32x16xf32>,
    %562 = vector.extract_strided_slice %557 {offsets = [32, 0], sizes = [32, 16], strides = [1, 1]} : vector<64x16xf32> to vector<32x16xf32>
    %c1_55 = arith.constant 1 : index
    %c0_56 = arith.constant 0 : index
    %c0_57 = arith.constant 0 : index
    %563 = vector.load %arg5[%c1_55, %c0_56, %c0_57] : memref<2x32x16xf32, #tpu.memory_space<vmem>>, vector<1x32x16xf32>
    %564 = vector.shape_cast %563 : vector<1x32x16xf32> to vector<32x16xf32>
    %565 = vector.shape_cast %562 : vector<32x16xf32> to vector<1x32x16xf32>
    tpu.vector_store %arg5[%c1_55, %c0_56, %c0_57], %565 {strides = array<i32>} : memref<2x32x16xf32, #tpu.memory_space<vmem>>, vector<1x32x16xf32>,
    return
  }
}

</mosaic_0001>

<llo_original>
// kernel: tpu_custom_call.1
$region0: #{tpu_custom_call.1}
  #allocation0 [shape = 'u32[]', space=smem, size = 0x4, offset = 0x4, fixed_abs, tag = 'smem constant byte address 0x4 - core index']
  #allocation1 [shape = 'u32[144,128]{1,0:T(1,128)}', space=vmem, size = 0x12000, scoped, tag = 'internal scratch']
  %s0 = inlined_call_operand.vmem [shape: f32[2,32,16], index: 0, kind: input, shape index: {}]
  %s1 = inlined_call_operand.vmem [shape: f32[16,64], index: 1, kind: input, shape index: {}]
  %s2 = inlined_call_operand.vmem [shape: f32[31,32], index: 2, kind: input, shape index: {}]
  %s3 = inlined_call_operand.vmem [shape: f32[32,16], index: 3, kind: input, shape index: {}]
  %s4 = inlined_call_operand.vmem [shape: f32[8,128], index: 4, kind: input, shape index: {}]
  %s5 = inlined_call_operand.vmem [shape: f32[2,32,16], index: 5, kind: output, shape index: {}]
  %s6 = sld [smem:[#allocation0]]
  $region30: #{tpu_custom_call.1} parent=0
    _
  %s8 = ssub.s32 1, %s6
  %s9 = scalar_select 0, %s8, %s6
  // Predicated region
  $region2: #{tpu_custom_call.1} parent=0 // pred_check
    _
  $region3: #{tpu_custom_call.1} parent=0 // pred_check_branch
    %11 = sbr.rel (0) target = $region5
  $region4: #{tpu_custom_call.1} parent=0 // pred_region
    _
  $region5: #{tpu_custom_call.1} parent=0 // pred_fallthru
    _
  // Predicated region
  $region6: #{tpu_custom_call.1} parent=0 // pred_check
    _
  $region7: #{tpu_custom_call.1} parent=0 // pred_check_branch
    %13 = sbr.rel (0) target = $region9
  $region8: #{tpu_custom_call.1} parent=0 // pred_region
    _
  $region9: #{tpu_custom_call.1} parent=0 // pred_fallthru
    _
  // Predicated region
  $region10: #{tpu_custom_call.1} parent=0 // pred_check
    _
  $region11: #{tpu_custom_call.1} parent=0 // pred_check_branch
    %15 = sbr.rel (0) target = $region13
  $region12: #{tpu_custom_call.1} parent=0 // pred_region
    _
  $region13: #{tpu_custom_call.1} parent=0 // pred_fallthru
    _
  // Predicated region
  $region14: #{tpu_custom_call.1} parent=0 // pred_check
    _
  $region15: #{tpu_custom_call.1} parent=0 // pred_check_branch
    %17 = sbr.rel (0) target = $region17
  $region16: #{tpu_custom_call.1} parent=0 // pred_region
    _
  $region17: #{tpu_custom_call.1} parent=0 // pred_fallthru
    _
  // Predicated region
  $region18: #{tpu_custom_call.1} parent=0 // pred_check
    _
  $region19: #{tpu_custom_call.1} parent=0 // pred_check_branch
    %19 = sbr.rel (0) target = $region21
  $region20: #{tpu_custom_call.1} parent=0 // pred_region
    _
  $region21: #{tpu_custom_call.1} parent=0 // pred_fallthru
    _
  %v20 = vld [vmem:[%s0] sm:$0xff]
  %v21 = vld [vmem:[%s0 + $0x8] sm:$0xff]
  %v22 = vld [vmem:[%s0 + $0x10] sm:$0xff]
  %v23 = vld [vmem:[%s0 + $0x18] sm:$0xff]
  %s24 = scalar_lea.vmem %s0, 32
  %v25 = vld [vmem:[%s24] sm:$0xff]
  %v26 = vld [vmem:[%s24 + $0x8] sm:$0xff]
  %v27 = vld [vmem:[%s24 + $0x10] sm:$0xff]
  %v28 = vld [vmem:[%s24 + $0x18] sm:$0xff]
  %v29 = vld [vmem:[%s4] sm:$0xff]
  %vm30 = vcmask 130048
  %v31 = vsel %vm30, %v20, 0.0
  %32 = vadd.xlane.f32.xlu0 %v31
  %v33 = vpop.xlane.xlu0 %32
  %v34 = vsel %vm30, %v21, 0.0
  %35 = vadd.xlane.f32.xlu0 %v34
  %v36 = vpop.xlane.xlu0 %35
  %v37 = vsel %vm30, %v22, 0.0
  %38 = vadd.xlane.f32.xlu0 %v37
  %v39 = vpop.xlane.xlu0 %38
  %v40 = vsel %vm30, %v23, 0.0
  %41 = vadd.xlane.f32.xlu0 %v40
  %v42 = vpop.xlane.xlu0 %41
  %v43 = vsel %vm30, %v25, 0.0
  %44 = vadd.xlane.f32.xlu0 %v43
  %v45 = vpop.xlane.xlu0 %44
  %v46 = vsel %vm30, %v26, 0.0
  %47 = vadd.xlane.f32.xlu0 %v46
  %v48 = vpop.xlane.xlu0 %47
  %v49 = vsel %vm30, %v27, 0.0
  %50 = vadd.xlane.f32.xlu0 %v49
  %v51 = vpop.xlane.xlu0 %50
  %v52 = vsel %vm30, %v28, 0.0
  %53 = vadd.xlane.f32.xlu0 %v52
  %v54 = vpop.xlane.xlu0 %53
  %v55 = vmul.f32 %v33, 0.0625
  %v56 = vmul.f32 %v36, 0.0625
  %v57 = vmul.f32 %v39, 0.0625
  %v58 = vmul.f32 %v42, 0.0625
  %v59 = vmul.f32 %v45, 0.0625
  %v60 = vmul.f32 %v48, 0.0625
  %v61 = vmul.f32 %v51, 0.0625
  %v62 = vmul.f32 %v54, 0.0625
  %v63 = vmul.f32 %v20, %v20
  %v64 = vmul.f32 %v21, %v21
  %v65 = vmul.f32 %v22, %v22
  %v66 = vmul.f32 %v23, %v23
  %v67 = vmul.f32 %v25, %v25
  %v68 = vmul.f32 %v26, %v26
  %v69 = vmul.f32 %v27, %v27
  %v70 = vmul.f32 %v28, %v28
  %v71 = vsel %vm30, %v63, 0.0
  %72 = vadd.xlane.f32.xlu0 %v71
  %v73 = vpop.xlane.xlu0 %72
  %v74 = vsel %vm30, %v64, 0.0
  %75 = vadd.xlane.f32.xlu0 %v74
  %v76 = vpop.xlane.xlu0 %75
  %v77 = vsel %vm30, %v65, 0.0
  %78 = vadd.xlane.f32.xlu0 %v77
  %v79 = vpop.xlane.xlu0 %78
  %v80 = vsel %vm30, %v66, 0.0
  %81 = vadd.xlane.f32.xlu0 %v80
  %v82 = vpop.xlane.xlu0 %81
  %v83 = vsel %vm30, %v67, 0.0
  %84 = vadd.xlane.f32.xlu0 %v83
  %v85 = vpop.xlane.xlu0 %84
  %v86 = vsel %vm30, %v68, 0.0
  %87 = vadd.xlane.f32.xlu0 %v86
  %v88 = vpop.xlane.xlu0 %87
  %v89 = vsel %vm30, %v69, 0.0
  %90 = vadd.xlane.f32.xlu0 %v89
  %v91 = vpop.xlane.xlu0 %90
  %v92 = vsel %vm30, %v70, 0.0
  %93 = vadd.xlane.f32.xlu0 %v92
  %v94 = vpop.xlane.xlu0 %93
  %v95 = vmul.f32 %v73, 0.0625
  %v96 = vmul.f32 %v76, 0.0625
  %v97 = vmul.f32 %v79, 0.0625
  %v98 = vmul.f32 %v82, 0.0625
  %v99 = vmul.f32 %v85, 0.0625
  %v100 = vmul.f32 %v88, 0.0625
  %v101 = vmul.f32 %v91, 0.0625
  %v102 = vmul.f32 %v94, 0.0625
  %v103 = vmul.f32 %v55, %v55
  %v104 = vmul.f32 %v56, %v56
  %v105 = vmul.f32 %v57, %v57
  %v106 = vmul.f32 %v58, %v58
  %v107 = vmul.f32 %v59, %v59
  %v108 = vmul.f32 %v60, %v60
  %v109 = vmul.f32 %v61, %v61
  %v110 = vmul.f32 %v62, %v62
  %v111 = vsub.f32 %v95, %v103
  %v112 = vsub.f32 %v96, %v104
  %v113 = vsub.f32 %v97, %v105
  %v114 = vsub.f32 %v98, %v106
  %v115 = vsub.f32 %v99, %v107
  %v116 = vsub.f32 %v100, %v108
  %v117 = vsub.f32 %v101, %v109
  %v118 = vsub.f32 %v102, %v110
  %v119 = vsub.f32 %v20, %v55
  %v120 = vsub.f32 %v21, %v56
  %v121 = vsub.f32 %v22, %v57
  %v122 = vsub.f32 %v23, %v58
  %v123 = vsub.f32 %v25, %v59
  %v124 = vsub.f32 %v26, %v60
  %v125 = vsub.f32 %v27, %v61
  %v126 = vsub.f32 %v28, %v62
  %v127 = vadd.f32 %v111, 1e-05
  %v128 = vadd.f32 %v112, 1e-05
  %v129 = vadd.f32 %v113, 1e-05
  %v130 = vadd.f32 %v114, 1e-05
  %v131 = vadd.f32 %v115, 1e-05
  %v132 = vadd.f32 %v116, 1e-05
  %v133 = vadd.f32 %v117, 1e-05
  %v134 = vadd.f32 %v118, 1e-05
  %v135 = vrsqrt.pop %v127
  %v136 = vrsqrt.pop %v128
  %v137 = vrsqrt.pop %v129
  %v138 = vrsqrt.pop %v130
  %v139 = vrsqrt.pop %v131
  %v140 = vrsqrt.pop %v132
  %v141 = vrsqrt.pop %v133
  %v142 = vrsqrt.pop %v134
  %v143 = vmul.f32 %v119, %v135
  %v144 = vmul.f32 %v120, %v136
  %v145 = vmul.f32 %v121, %v137
  %v146 = vmul.f32 %v122, %v138
  %v147 = vmul.f32 %v123, %v139
  %v148 = vmul.f32 %v124, %v140
  %v149 = vmul.f32 %v125, %v141
  %v150 = vmul.f32 %v126, %v142
  %v151 = vld [vmem:[%s1] sm:$0xff]
  %v152 = vld [vmem:[%s1 + $0x8] sm:$0xff]
  %v153 = vlaneseq
  %v154 = vshrl.u32 %v153, 7
  %v155 = vsub.s32 0, %v154
  %v156 = vrot.slane %v29, %v155
  %v158 = vsel %vm30, %v143, 0
  %v161 = vsel %vm30, %v144, 0
  %v164 = vsel %vm30, %v145, 0
  %v167 = vsel %vm30, %v146, 0
  %v170 = vsel %vm30, %v147, 0
  %v173 = vsel %vm30, %v148, 0
  %v176 = vsel %vm30, %v149, 0
  %v179 = vsel %vm30, %v150, 0
  %181 = vmatprep.subr.mxu0 0.0
  %182 = vmatpush1.msra.mxu0 %v151
  %183 = vmatprep.subr.mxu0 0.0
  %184 = vmatpush1.msra.mxu0 %v152
  %185 = vmatprep.subr.mxu0 0.0
  %186 = vmatpush1.msra.mxu0 0.0
  %187 = vmatprep.subr.mxu0 0.0
  %188 = vmatpush1.msra.mxu0 0.0
  %189 = vmatprep.subr.mxu0 0.0
  %190 = vmatpush1.msra.mxu0 0.0
  %191 = vmatprep.subr.mxu0 0.0
  %192 = vmatpush1.msra.mxu0 0.0
  %193 = vmatprep.subr.mxu0 0.0
  %194 = vmatpush1.msra.mxu0 0.0
  %195 = vmatprep.subr.mxu0 0.0
  %196 = vmatpush1.msra.mxu0 0.0
  %197 = vmatprep.subr.mxu0 0.0
  %198 = vmatpush1.msra.mxu0 0.0
  %199 = vmatprep.subr.mxu0 0.0
  %200 = vmatpush1.msra.mxu0 0.0
  %201 = vmatprep.subr.mxu0 0.0
  %202 = vmatpush1.msra.mxu0 0.0
  %203 = vmatprep.subr.mxu0 0.0
  %204 = vmatpush1.msra.mxu0 0.0
  %205 = vmatprep.subr.mxu0 0.0
  %206 = vmatpush1.msra.mxu0 0.0
  %207 = vmatprep.subr.mxu0 0.0
  %208 = vmatpush1.msra.mxu0 0.0
  %209 = vmatprep.subr.mxu0 0.0
  %210 = vmatpush1.msra.mxu0 0.0
  %211 = vmatprep.subr.mxu0 0.0
  %212 = vmatpush1.msra.mxu0 0.0
  %213 = vmatprep.subr.mxu0 0.0
  %214 = vmatpush1.msra.mxu0 0.0
  %215 = vmatprep.subr.mxu0 0.0
  %216 = vmatpush1.msra.mxu0 0.0
  %217 = vmatprep.subr.mxu0 0.0
  %218 = vmatpush1.msra.mxu0 0.0
  %219 = vmatprep.subr.mxu0 0.0
  %220 = vmatpush1.msra.mxu0 0.0
  %221 = vmatprep.subr.mxu0 0.0
  %222 = vmatpush1.msra.mxu0 0.0
  %223 = vmatprep.subr.mxu0 0.0
  %224 = vmatpush1.msra.mxu0 0.0
  %225 = vmatprep.subr.mxu0 0.0
  %226 = vmatpush1.msra.mxu0 0.0
  %227 = vmatprep.subr.mxu0 0.0
  %228 = vmatpush1.msra.mxu0 0.0
  %229 = vmatprep.subr.mxu0 0.0
  %230 = vmatpush1.msra.mxu0 0.0
  %231 = vmatprep.subr.mxu0 0.0
  %232 = vmatpush1.msra.mxu0 0.0
  %233 = vmatprep.subr.mxu0 0.0
  %234 = vmatpush1.msra.mxu0 0.0
  %235 = vmatprep.subr.mxu0 0.0
  %236 = vmatpush1.msra.mxu0 0.0
  %237 = vmatprep.subr.mxu0 0.0
  %238 = vmatpush1.msra.mxu0 0.0
  %239 = vmatprep.subr.mxu0 0.0
  %240 = vmatpush1.msra.mxu0 0.0
  %241 = vmatprep.subr.mxu0 0.0
  %242 = vmatpush1.msra.mxu0 0.0
  %243 = vmatprep.subr.mxu0 0.0
  %244 = vmatpush1.msra.mxu0 0.0
  %245 = vmatprep.mubr.f32.mxu0 0.0
  %246 = vmatmul.mubr.f32.gmra.mrb[0].mxu0 %v158
  %v247 = vpop.f32.mrb[0].mxu0
  %v248 = vadd.f32 %v156, %v247
  %v249 = vpop.f32.mrb[0].mxu0
  %250 = vmatprep.mubr.f32.mxu0 0.0
  %251 = vmatmul.mubr.f32.gmra.mrb[0].mxu0 %v161
  %v252 = vpop.f32.mrb[0].mxu0
  %v253 = vadd.f32 %v156, %v252
  %v254 = vpop.f32.mrb[0].mxu0
  %255 = vmatprep.mubr.f32.mxu0 0.0
  %256 = vmatmul.mubr.f32.gmra.mrb[0].mxu0 %v164
  %v257 = vpop.f32.mrb[0].mxu0
  %v258 = vadd.f32 %v156, %v257
  %v259 = vpop.f32.mrb[0].mxu0
  %260 = vmatprep.mubr.f32.mxu0 0.0
  %261 = vmatmul.mubr.f32.gmra.mrb[0].mxu0 %v167
  %v262 = vpop.f32.mrb[0].mxu0
  %v263 = vadd.f32 %v156, %v262
  %v264 = vpop.f32.mrb[0].mxu0
  %265 = vmatprep.mubr.f32.mxu0 0.0
  %266 = vmatmul.mubr.f32.gmra.mrb[0].mxu0 %v170
  %v267 = vpop.f32.mrb[0].mxu0
  %v268 = vadd.f32 %v156, %v267
  %v269 = vpop.f32.mrb[0].mxu0
  %270 = vmatprep.mubr.f32.mxu0 0.0
  %271 = vmatmul.mubr.f32.gmra.mrb[0].mxu0 %v173
  %v272 = vpop.f32.mrb[0].mxu0
  %v273 = vadd.f32 %v156, %v272
  %v274 = vpop.f32.mrb[0].mxu0
  %275 = vmatprep.mubr.f32.mxu0 0.0
  %276 = vmatmul.mubr.f32.gmra.mrb[0].mxu0 %v176
  %v277 = vpop.f32.mrb[0].mxu0
  %v278 = vadd.f32 %v156, %v277
  %v279 = vpop.f32.mrb[0].mxu0
  %280 = vmatprep.mubr.f32.mxu0 0.0
  %281 = vmatmul.mubr.f32.gmra.mrb[0].mxu0 %v179
  %v282 = vpop.f32.mrb[0].mxu0
  %v283 = vadd.f32 %v156, %v282
  %v284 = vpop.f32.mrb[0].mxu0
  %285 = vdwg.mxu0
  %v286 = vxor.u32 %v248, 2147483648
  %v287 = vxor.u32 %v253, 2147483648
  %v288 = vxor.u32 %v258, 2147483648
  %v289 = vxor.u32 %v263, 2147483648
  %v290 = vxor.u32 %v268, 2147483648
  %v291 = vxor.u32 %v273, 2147483648
  %v292 = vxor.u32 %v278, 2147483648
  %v293 = vxor.u32 %v283, 2147483648
  %v294 = vmul.f32 %v286, 1.442695
  %v295 = vpow.pop %v294
  %v296 = vmul.f32 %v287, 1.442695
  %v297 = vpow.pop %v296
  %v298 = vmul.f32 %v288, 1.442695
  %v299 = vpow.pop %v298
  %v300 = vmul.f32 %v289, 1.442695
  %v301 = vpow.pop %v300
  %v302 = vmul.f32 %v290, 1.442695
  %v303 = vpow.pop %v302
  %v304 = vmul.f32 %v291, 1.442695
  %v305 = vpow.pop %v304
  %v306 = vmul.f32 %v292, 1.442695
  %v307 = vpow.pop %v306
  %v308 = vmul.f32 %v293, 1.442695
  %v309 = vpow.pop %v308
  %v310 = vadd.f32 %v295, 1.0
  %v311 = vadd.f32 %v297, 1.0
  %v312 = vadd.f32 %v299, 1.0
  %v313 = vadd.f32 %v301, 1.0
  %v314 = vadd.f32 %v303, 1.0
  %v315 = vadd.f32 %v305, 1.0
  %v316 = vadd.f32 %v307, 1.0
  %v317 = vadd.f32 %v309, 1.0
  %v318 = vrcp.pop %v310
  %v319 = vmul.f32 1.0, %v318
  %v320 = vrcp.pop %v311
  %v321 = vmul.f32 1.0, %v320
  %v322 = vrcp.pop %v312
  %v323 = vmul.f32 1.0, %v322
  %v324 = vrcp.pop %v313
  %v325 = vmul.f32 1.0, %v324
  %v326 = vrcp.pop %v314
  %v327 = vmul.f32 1.0, %v326
  %v328 = vrcp.pop %v315
  %v329 = vmul.f32 1.0, %v328
  %v330 = vrcp.pop %v316
  %v331 = vmul.f32 1.0, %v330
  %v332 = vrcp.pop %v317
  %v333 = vmul.f32 1.0, %v332
  %v334 = vmul.f32 %v248, %v319
  %v335 = vmul.f32 %v253, %v321
  %v336 = vmul.f32 %v258, %v323
  %v337 = vmul.f32 %v263, %v325
  %v338 = vmul.f32 %v268, %v327
  %v339 = vmul.f32 %v273, %v329
  %v340 = vmul.f32 %v278, %v331
  %v341 = vmul.f32 %v283, %v333
  %350 = vrot.lane.b32.xlu0 %v334, 96
  %v351 = vpop.permute.xlu0 %350
  %352 = vrot.lane.b32.xlu0 %v335, 96
  %v353 = vpop.permute.xlu0 %352
  %354 = vrot.lane.b32.xlu0 %v336, 96
  %v355 = vpop.permute.xlu0 %354
  %356 = vrot.lane.b32.xlu0 %v337, 96
  %v357 = vpop.permute.xlu0 %356
  %358 = vrot.lane.b32.xlu0 %v338, 96
  %v359 = vpop.permute.xlu0 %358
  %360 = vrot.lane.b32.xlu0 %v339, 96
  %v361 = vpop.permute.xlu0 %360
  %362 = vrot.lane.b32.xlu0 %v340, 96
  %v363 = vpop.permute.xlu0 %362
  %364 = vrot.lane.b32.xlu0 %v341, 96
  %v365 = vpop.permute.xlu0 %364
  %v374 = vmul.f32 %v248, %v351
  %v375 = vmul.f32 %v253, %v353
  %v376 = vmul.f32 %v258, %v355
  %v377 = vmul.f32 %v263, %v357
  %v378 = vmul.f32 %v268, %v359
  %v379 = vmul.f32 %v273, %v361
  %v380 = vmul.f32 %v278, %v363
  %v381 = vmul.f32 %v283, %v365
  %vm386 = vcmask 1046528
  %v387 = vrot.slane %v374, 1
  %v388 = vrot.slane %v375, 1
  %v389 = vsel %vm386, %v387, %v388
  %v390 = vrot.slane %v376, 1
  %v391 = vsel %vm386, %v388, %v390
  %v392 = vrot.slane %v377, 1
  %v393 = vsel %vm386, %v390, %v392
  %v403 = vrot.slane %v378, 1
  %v404 = vrot.slane %v379, 1
  %v405 = vsel %vm386, %v403, %v404
  %v406 = vrot.slane %v380, 1
  %v407 = vsel %vm386, %v404, %v406
  %v408 = vrot.slane %v381, 1
  %v409 = vsel %vm386, %v406, %v408
  %v415 = vsel %vm386, 0.0, %v387
  %v416 = vsel %vm386, %v392, 0.0
  %v417 = vsel %vm386, 0.0, %v403
  %v418 = vsel %vm386, %v408, 0.0
  %vm419 = vcmask 1045504
  %v420 = vrot.slane %v374, 2
  %v421 = vrot.slane %v375, 2
  %v422 = vsel %vm419, %v420, %v421
  %v423 = vrot.slane %v376, 2
  %v424 = vsel %vm419, %v421, %v423
  %v425 = vrot.slane %v377, 2
  %v426 = vsel %vm419, %v423, %v425
  %v432 = vrot.slane %v378, 2
  %v433 = vrot.slane %v379, 2
  %v434 = vsel %vm419, %v432, %v433
  %v435 = vrot.slane %v380, 2
  %v436 = vsel %vm419, %v433, %v435
  %v437 = vrot.slane %v381, 2
  %v438 = vsel %vm419, %v435, %v437
  %v444 = vsel %vm419, 0.0, %v420
  %v445 = vsel %vm419, %v425, 0.0
  %v446 = vsel %vm419, 0.0, %v432
  %v447 = vsel %vm419, %v437, 0.0
  %vm448 = vcmask 1044480
  %v449 = vrot.slane %v374, 3
  %v450 = vrot.slane %v375, 3
  %v451 = vsel %vm448, %v449, %v450
  %v452 = vrot.slane %v376, 3
  %v453 = vsel %vm448, %v450, %v452
  %v454 = vrot.slane %v377, 3
  %v455 = vsel %vm448, %v452, %v454
  %v461 = vrot.slane %v378, 3
  %v462 = vrot.slane %v379, 3
  %v463 = vsel %vm448, %v461, %v462
  %v464 = vrot.slane %v380, 3
  %v465 = vsel %vm448, %v462, %v464
  %v466 = vrot.slane %v381, 3
  %v467 = vsel %vm448, %v464, %v466
  %v473 = vsel %vm448, 0.0, %v449
  %v474 = vsel %vm448, %v454, 0.0
  %v475 = vsel %vm448, 0.0, %v461
  %v476 = vsel %vm448, %v466, 0.0
  %vm477 = vcmask 1043456
  %v478 = vrot.slane %v374, 4
  %v479 = vrot.slane %v375, 4
  %v480 = vsel %vm477, %v478, %v479
  %v481 = vrot.slane %v376, 4
  %v482 = vsel %vm477, %v479, %v481
  %v483 = vrot.slane %v377, 4
  %v484 = vsel %vm477, %v481, %v483
  %v490 = vrot.slane %v378, 4
  %v491 = vrot.slane %v379, 4
  %v492 = vsel %vm477, %v490, %v491
  %v493 = vrot.slane %v380, 4
  %v494 = vsel %vm477, %v491, %v493
  %v495 = vrot.slane %v381, 4
  %v496 = vsel %vm477, %v493, %v495
  %v502 = vsel %vm477, 0.0, %v478
  %v503 = vsel %vm477, %v483, 0.0
  %v504 = vsel %vm477, 0.0, %v490
  %v505 = vsel %vm477, %v495, 0.0
  %vm506 = vcmask 1042432
  %v507 = vrot.slane %v374, 5
  %v508 = vrot.slane %v375, 5
  %v509 = vsel %vm506, %v507, %v508
  %v510 = vrot.slane %v376, 5
  %v511 = vsel %vm506, %v508, %v510
  %v512 = vrot.slane %v377, 5
  %v513 = vsel %vm506, %v510, %v512
  %v519 = vrot.slane %v378, 5
  %v520 = vrot.slane %v379, 5
  %v521 = vsel %vm506, %v519, %v520
  %v522 = vrot.slane %v380, 5
  %v523 = vsel %vm506, %v520, %v522
  %v524 = vrot.slane %v381, 5
  %v525 = vsel %vm506, %v522, %v524
  %v531 = vsel %vm506, 0.0, %v507
  %v532 = vsel %vm506, %v512, 0.0
  %v533 = vsel %vm506, 0.0, %v519
  %v534 = vsel %vm506, %v524, 0.0
  %vm535 = vcmask 1041408
  %v536 = vrot.slane %v374, 6
  %v537 = vrot.slane %v375, 6
  %v538 = vsel %vm535, %v536, %v537
  %v539 = vrot.slane %v376, 6
  %v540 = vsel %vm535, %v537, %v539
  %v541 = vrot.slane %v377, 6
  %v542 = vsel %vm535, %v539, %v541
  %v548 = vrot.slane %v378, 6
  %v549 = vrot.slane %v379, 6
  %v550 = vsel %vm535, %v548, %v549
  %v551 = vrot.slane %v380, 6
  %v552 = vsel %vm535, %v549, %v551
  %v553 = vrot.slane %v381, 6
  %v554 = vsel %vm535, %v551, %v553
  %v560 = vsel %vm535, 0.0, %v536
  %v561 = vsel %vm535, %v541, 0.0
  %v562 = vsel %vm535, 0.0, %v548
  %v563 = vsel %vm535, %v553, 0.0
  %vm564 = vcmask 1040384
  %v565 = vrot.slane %v374, 7
  %v566 = vrot.slane %v375, 7
  %v567 = vsel %vm564, %v565, %v566
  %v568 = vrot.slane %v376, 7
  %v569 = vsel %vm564, %v566, %v568
  %v570 = vrot.slane %v377, 7
  %v571 = vsel %vm564, %v568, %v570
  %v577 = vrot.slane %v378, 7
  %v578 = vrot.slane %v379, 7
  %v579 = vsel %vm564, %v577, %v578
  %v580 = vrot.slane %v380, 7
  %v581 = vsel %vm564, %v578, %v580
  %v582 = vrot.slane %v381, 7
  %v583 = vsel %vm564, %v580, %v582
  %v589 = vsel %vm564, 0.0, %v565
  %v590 = vsel %vm564, %v570, 0.0
  %v591 = vsel %vm564, 0.0, %v577
  %v592 = vsel %vm564, %v582, 0.0
  %v593 = vld [vmem:[%s2] sm:$0xff]
  %v594 = vld [vmem:[%s2 + $0x8] sm:$0xff]
  %v595 = vld [vmem:[%s2 + $0x10] sm:$0xff]
  %v596 = vld [vmem:[%s2 + $0x18] sm:$0x7f]
  %v597 = vlaneseq
  %v598 = vshrl.u32 %v597, 7
  %v599 = vsub.s32 0, %v598
  %v600 = vrot.slane %v593, %v599
  %v601 = vmul.f32 %v600, 0.0
  %v602 = vmul.f32 %v415, %v600
  %v603 = vmul.f32 %v389, %v600
  %v604 = vmul.f32 %v391, %v600
  %v605 = vadd.f32 %v601, 0.0
  %v606 = vadd.f32 %v602, 0.0
  %v607 = vadd.f32 %v603, 0.0
  %v608 = vadd.f32 %v604, 0.0
  %v609 = vlaneseq
  %v610 = vshrl.u32 %v609, 7
  %v611 = vsub.s32 1, %v610
  %v612 = vrot.slane %v593, %v611
  %v613 = vmul.f32 %v612, 0.0
  %v614 = vmul.f32 %v444, %v612
  %v615 = vmul.f32 %v422, %v612
  %v616 = vmul.f32 %v424, %v612
  %v617 = vadd.f32 %v613, 0.0
  %v618 = vadd.f32 %v614, 0.0
  %v619 = vadd.f32 %v615, 0.0
  %v620 = vadd.f32 %v616, 0.0
  %v621 = vlaneseq
  %v622 = vshrl.u32 %v621, 7
  %v623 = vsub.s32 2, %v622
  %v624 = vrot.slane %v593, %v623
  %v625 = vmul.f32 %v624, 0.0
  %v626 = vmul.f32 %v473, %v624
  %v627 = vmul.f32 %v451, %v624
  %v628 = vmul.f32 %v453, %v624
  %v629 = vadd.f32 %v625, 0.0
  %v630 = vadd.f32 %v626, 0.0
  %v631 = vadd.f32 %v627, 0.0
  %v632 = vadd.f32 %v628, 0.0
  %v633 = vlaneseq
  %v634 = vshrl.u32 %v633, 7
  %v635 = vsub.s32 3, %v634
  %v636 = vrot.slane %v593, %v635
  %v637 = vmul.f32 %v636, 0.0
  %v638 = vmul.f32 %v502, %v636
  %v639 = vmul.f32 %v480, %v636
  %v640 = vmul.f32 %v482, %v636
  %v641 = vadd.f32 %v637, 0.0
  %v642 = vadd.f32 %v638, 0.0
  %v643 = vadd.f32 %v639, 0.0
  %v644 = vadd.f32 %v640, 0.0
  %v645 = vlaneseq
  %v646 = vshrl.u32 %v645, 7
  %v647 = vsub.s32 4, %v646
  %v648 = vrot.slane %v593, %v647
  %v649 = vmul.f32 %v648, 0.0
  %v650 = vmul.f32 %v531, %v648
  %v651 = vmul.f32 %v509, %v648
  %v652 = vmul.f32 %v511, %v648
  %v653 = vadd.f32 %v605, %v649
  %v654 = vadd.f32 %v606, %v650
  %v655 = vadd.f32 %v607, %v651
  %v656 = vadd.f32 %v608, %v652
  %v657 = vlaneseq
  %v658 = vshrl.u32 %v657, 7
  %v659 = vsub.s32 5, %v658
  %v660 = vrot.slane %v593, %v659
  %v661 = vmul.f32 %v660, 0.0
  %v662 = vmul.f32 %v560, %v660
  %v663 = vmul.f32 %v538, %v660
  %v664 = vmul.f32 %v540, %v660
  %v665 = vadd.f32 %v617, %v661
  %v666 = vadd.f32 %v618, %v662
  %v667 = vadd.f32 %v619, %v663
  %v668 = vadd.f32 %v620, %v664
  %v669 = vlaneseq
  %v670 = vshrl.u32 %v669, 7
  %v671 = vsub.s32 6, %v670
  %v672 = vrot.slane %v593, %v671
  %v673 = vmul.f32 %v672, 0.0
  %v674 = vmul.f32 %v589, %v672
  %v675 = vmul.f32 %v567, %v672
  %v676 = vmul.f32 %v569, %v672
  %v677 = vadd.f32 %v629, %v673
  %v678 = vadd.f32 %v630, %v674
  %v679 = vadd.f32 %v631, %v675
  %v680 = vadd.f32 %v632, %v676
  %v681 = vlaneseq
  %v682 = vshrl.u32 %v681, 7
  %v683 = vsub.s32 7, %v682
  %v684 = vrot.slane %v593, %v683
  %v685 = vmul.f32 %v684, 0.0
  %v686 = vmul.f32 %v374, %v684
  %v687 = vmul.f32 %v375, %v684
  %v688 = vmul.f32 %v376, %v684
  %v689 = vadd.f32 %v641, %v685
  %v690 = vadd.f32 %v642, %v686
  %v691 = vadd.f32 %v643, %v687
  %v692 = vadd.f32 %v644, %v688
  %v693 = vlaneseq
  %v694 = vshrl.u32 %v693, 7
  %v695 = vsub.s32 0, %v694
  %v696 = vrot.slane %v594, %v695
  %v697 = vmul.f32 %v415, %v696
  %v698 = vmul.f32 %v389, %v696
  %v699 = vmul.f32 %v391, %v696
  %v700 = vmul.f32 %v393, %v696
  %v701 = vadd.f32 %v653, %v697
  %v702 = vadd.f32 %v654, %v698
  %v703 = vadd.f32 %v655, %v699
  %v704 = vadd.f32 %v656, %v700
  %v705 = vlaneseq
  %v706 = vshrl.u32 %v705, 7
  %v707 = vsub.s32 1, %v706
  %v708 = vrot.slane %v594, %v707
  %v709 = vmul.f32 %v444, %v708
  %v710 = vmul.f32 %v422, %v708
  %v711 = vmul.f32 %v424, %v708
  %v712 = vmul.f32 %v426, %v708
  %v713 = vadd.f32 %v665, %v709
  %v714 = vadd.f32 %v666, %v710
  %v715 = vadd.f32 %v667, %v711
  %v716 = vadd.f32 %v668, %v712
  %v717 = vlaneseq
  %v718 = vshrl.u32 %v717, 7
  %v719 = vsub.s32 2, %v718
  %v720 = vrot.slane %v594, %v719
  %v721 = vmul.f32 %v473, %v720
  %v722 = vmul.f32 %v451, %v720
  %v723 = vmul.f32 %v453, %v720
  %v724 = vmul.f32 %v455, %v720
  %v725 = vadd.f32 %v677, %v721
  %v726 = vadd.f32 %v678, %v722
  %v727 = vadd.f32 %v679, %v723
  %v728 = vadd.f32 %v680, %v724
  %v729 = vlaneseq
  %v730 = vshrl.u32 %v729, 7
  %v731 = vsub.s32 3, %v730
  %v732 = vrot.slane %v594, %v731
  %v733 = vmul.f32 %v502, %v732
  %v734 = vmul.f32 %v480, %v732
  %v735 = vmul.f32 %v482, %v732
  %v736 = vmul.f32 %v484, %v732
  %v737 = vadd.f32 %v689, %v733
  %v738 = vadd.f32 %v690, %v734
  %v739 = vadd.f32 %v691, %v735
  %v740 = vadd.f32 %v692, %v736
  %v741 = vlaneseq
  %v742 = vshrl.u32 %v741, 7
  %v743 = vsub.s32 4, %v742
  %v744 = vrot.slane %v594, %v743
  %v745 = vmul.f32 %v531, %v744
  %v746 = vmul.f32 %v509, %v744
  %v747 = vmul.f32 %v511, %v744
  %v748 = vmul.f32 %v513, %v744
  %v749 = vadd.f32 %v701, %v745
  %v750 = vadd.f32 %v702, %v746
  %v751 = vadd.f32 %v703, %v747
  %v752 = vadd.f32 %v704, %v748
  %v753 = vlaneseq
  %v754 = vshrl.u32 %v753, 7
  %v755 = vsub.s32 5, %v754
  %v756 = vrot.slane %v594, %v755
  %v757 = vmul.f32 %v560, %v756
  %v758 = vmul.f32 %v538, %v756
  %v759 = vmul.f32 %v540, %v756
  %v760 = vmul.f32 %v542, %v756
  %v761 = vadd.f32 %v713, %v757
  %v762 = vadd.f32 %v714, %v758
  %v763 = vadd.f32 %v715, %v759
  %v764 = vadd.f32 %v716, %v760
  %v765 = vlaneseq
  %v766 = vshrl.u32 %v765, 7
  %v767 = vsub.s32 6, %v766
  %v768 = vrot.slane %v594, %v767
  %v769 = vmul.f32 %v589, %v768
  %v770 = vmul.f32 %v567, %v768
  %v771 = vmul.f32 %v569, %v768
  %v772 = vmul.f32 %v571, %v768
  %v773 = vadd.f32 %v725, %v769
  %v774 = vadd.f32 %v726, %v770
  %v775 = vadd.f32 %v727, %v771
  %v776 = vadd.f32 %v728, %v772
  %v777 = vlaneseq
  %v778 = vshrl.u32 %v777, 7
  %v779 = vsub.s32 7, %v778
  %v780 = vrot.slane %v594, %v779
  %v781 = vmul.f32 %v374, %v780
  %v782 = vmul.f32 %v375, %v780
  %v783 = vmul.f32 %v376, %v780
  %v784 = vmul.f32 %v377, %v780
  %v785 = vadd.f32 %v737, %v781
  %v786 = vadd.f32 %v738, %v782
  %v787 = vadd.f32 %v739, %v783
  %v788 = vadd.f32 %v740, %v784
  %v789 = vlaneseq
  %v790 = vshrl.u32 %v789, 7
  %v791 = vsub.s32 0, %v790
  %v792 = vrot.slane %v595, %v791
  %v793 = vmul.f32 %v389, %v792
  %v794 = vmul.f32 %v391, %v792
  %v795 = vmul.f32 %v393, %v792
  %v796 = vmul.f32 %v416, %v792
  %v797 = vadd.f32 %v749, %v793
  %v798 = vadd.f32 %v750, %v794
  %v799 = vadd.f32 %v751, %v795
  %v800 = vadd.f32 %v752, %v796
  %v801 = vlaneseq
  %v802 = vshrl.u32 %v801, 7
  %v803 = vsub.s32 1, %v802
  %v804 = vrot.slane %v595, %v803
  %v805 = vmul.f32 %v422, %v804
  %v806 = vmul.f32 %v424, %v804
  %v807 = vmul.f32 %v426, %v804
  %v808 = vmul.f32 %v445, %v804
  %v809 = vadd.f32 %v761, %v805
  %v810 = vadd.f32 %v762, %v806
  %v811 = vadd.f32 %v763, %v807
  %v812 = vadd.f32 %v764, %v808
  %v813 = vlaneseq
  %v814 = vshrl.u32 %v813, 7
  %v815 = vsub.s32 2, %v814
  %v816 = vrot.slane %v595, %v815
  %v817 = vmul.f32 %v451, %v816
  %v818 = vmul.f32 %v453, %v816
  %v819 = vmul.f32 %v455, %v816
  %v820 = vmul.f32 %v474, %v816
  %v821 = vadd.f32 %v773, %v817
  %v822 = vadd.f32 %v774, %v818
  %v823 = vadd.f32 %v775, %v819
  %v824 = vadd.f32 %v776, %v820
  %v825 = vlaneseq
  %v826 = vshrl.u32 %v825, 7
  %v827 = vsub.s32 3, %v826
  %v828 = vrot.slane %v595, %v827
  %v829 = vmul.f32 %v480, %v828
  %v830 = vmul.f32 %v482, %v828
  %v831 = vmul.f32 %v484, %v828
  %v832 = vmul.f32 %v503, %v828
  %v833 = vadd.f32 %v785, %v829
  %v834 = vadd.f32 %v786, %v830
  %v835 = vadd.f32 %v787, %v831
  %v836 = vadd.f32 %v788, %v832
  %v837 = vlaneseq
  %v838 = vshrl.u32 %v837, 7
  %v839 = vsub.s32 4, %v838
  %v840 = vrot.slane %v595, %v839
  %v841 = vmul.f32 %v509, %v840
  %v842 = vmul.f32 %v511, %v840
  %v843 = vmul.f32 %v513, %v840
  %v844 = vmul.f32 %v532, %v840
  %v845 = vadd.f32 %v797, %v841
  %v846 = vadd.f32 %v798, %v842
  %v847 = vadd.f32 %v799, %v843
  %v848 = vadd.f32 %v800, %v844
  %v849 = vlaneseq
  %v850 = vshrl.u32 %v849, 7
  %v851 = vsub.s32 5, %v850
  %v852 = vrot.slane %v595, %v851
  %v853 = vmul.f32 %v538, %v852
  %v854 = vmul.f32 %v540, %v852
  %v855 = vmul.f32 %v542, %v852
  %v856 = vmul.f32 %v561, %v852
  %v857 = vadd.f32 %v809, %v853
  %v858 = vadd.f32 %v810, %v854
  %v859 = vadd.f32 %v811, %v855
  %v860 = vadd.f32 %v812, %v856
  %v861 = vlaneseq
  %v862 = vshrl.u32 %v861, 7
  %v863 = vsub.s32 6, %v862
  %v864 = vrot.slane %v595, %v863
  %v865 = vmul.f32 %v567, %v864
  %v866 = vmul.f32 %v569, %v864
  %v867 = vmul.f32 %v571, %v864
  %v868 = vmul.f32 %v590, %v864
  %v869 = vadd.f32 %v821, %v865
  %v870 = vadd.f32 %v822, %v866
  %v871 = vadd.f32 %v823, %v867
  %v872 = vadd.f32 %v824, %v868
  %v873 = vlaneseq
  %v874 = vshrl.u32 %v873, 7
  %v875 = vsub.s32 7, %v874
  %v876 = vrot.slane %v595, %v875
  %v877 = vmul.f32 %v375, %v876
  %v878 = vmul.f32 %v376, %v876
  %v879 = vmul.f32 %v377, %v876
  %v880 = vmul.f32 %v876, 0.0
  %v881 = vadd.f32 %v833, %v877
  %v882 = vadd.f32 %v834, %v878
  %v883 = vadd.f32 %v835, %v879
  %v884 = vadd.f32 %v836, %v880
  %v885 = vlaneseq
  %v886 = vshrl.u32 %v885, 7
  %v887 = vsub.s32 0, %v886
  %v888 = vrot.slane %v596, %v887
  %v889 = vmul.f32 %v391, %v888
  %v890 = vmul.f32 %v393, %v888
  %v891 = vmul.f32 %v416, %v888
  %v892 = vmul.f32 %v888, 0.0
  %v893 = vadd.f32 %v845, %v889
  %v894 = vadd.f32 %v846, %v890
  %v895 = vadd.f32 %v847, %v891
  %v896 = vadd.f32 %v848, %v892
  %v897 = vlaneseq
  %v898 = vshrl.u32 %v897, 7
  %v899 = vsub.s32 1, %v898
  %v900 = vrot.slane %v596, %v899
  %v901 = vmul.f32 %v424, %v900
  %v902 = vmul.f32 %v426, %v900
  %v903 = vmul.f32 %v445, %v900
  %v904 = vmul.f32 %v900, 0.0
  %v905 = vadd.f32 %v857, %v901
  %v906 = vadd.f32 %v858, %v902
  %v907 = vadd.f32 %v859, %v903
  %v908 = vadd.f32 %v860, %v904
  %v909 = vlaneseq
  %v910 = vshrl.u32 %v909, 7
  %v911 = vsub.s32 2, %v910
  %v912 = vrot.slane %v596, %v911
  %v913 = vmul.f32 %v453, %v912
  %v914 = vmul.f32 %v455, %v912
  %v915 = vmul.f32 %v474, %v912
  %v916 = vmul.f32 %v912, 0.0
  %v917 = vadd.f32 %v869, %v913
  %v918 = vadd.f32 %v870, %v914
  %v919 = vadd.f32 %v871, %v915
  %v920 = vadd.f32 %v872, %v916
  %v921 = vlaneseq
  %v922 = vshrl.u32 %v921, 7
  %v923 = vsub.s32 3, %v922
  %v924 = vrot.slane %v596, %v923
  %v925 = vmul.f32 %v482, %v924
  %v926 = vmul.f32 %v484, %v924
  %v927 = vmul.f32 %v503, %v924
  %v928 = vmul.f32 %v924, 0.0
  %v929 = vadd.f32 %v881, %v925
  %v930 = vadd.f32 %v882, %v926
  %v931 = vadd.f32 %v883, %v927
  %v932 = vadd.f32 %v884, %v928
  %v933 = vlaneseq
  %v934 = vshrl.u32 %v933, 7
  %v935 = vsub.s32 4, %v934
  %v936 = vrot.slane %v596, %v935
  %v937 = vmul.f32 %v511, %v936
  %v938 = vmul.f32 %v513, %v936
  %v939 = vmul.f32 %v532, %v936
  %v940 = vmul.f32 %v936, 0.0
  %v941 = vadd.f32 %v893, %v937
  %v942 = vadd.f32 %v894, %v938
  %v943 = vadd.f32 %v895, %v939
  %v944 = vadd.f32 %v896, %v940
  %v945 = vlaneseq
  %v946 = vshrl.u32 %v945, 7
  %v947 = vsub.s32 5, %v946
  %v948 = vrot.slane %v596, %v947
  %v949 = vmul.f32 %v540, %v948
  %v950 = vmul.f32 %v542, %v948
  %v951 = vmul.f32 %v561, %v948
  %v952 = vmul.f32 %v948, 0.0
  %v953 = vadd.f32 %v905, %v949
  %v954 = vadd.f32 %v906, %v950
  %v955 = vadd.f32 %v907, %v951
  %v956 = vadd.f32 %v908, %v952
  %v957 = vlaneseq
  %v958 = vshrl.u32 %v957, 7
  %v959 = vsub.s32 6, %v958
  %v960 = vrot.slane %v596, %v959
  %v961 = vmul.f32 %v569, %v960
  %v962 = vmul.f32 %v571, %v960
  %v963 = vmul.f32 %v590, %v960
  %v964 = vmul.f32 %v960, 0.0
  %v965 = vadd.f32 %v917, %v961
  %v966 = vadd.f32 %v918, %v962
  %v967 = vadd.f32 %v919, %v963
  %v968 = vadd.f32 %v920, %v964
  %v969 = vadd.f32 %v941, %v953
  %v970 = vadd.f32 %v942, %v954
  %v971 = vadd.f32 %v943, %v955
  %v972 = vadd.f32 %v944, %v956
  %v973 = vadd.f32 %v965, %v929
  %v974 = vadd.f32 %v966, %v930
  %v975 = vadd.f32 %v967, %v931
  %v976 = vadd.f32 %v968, %v932
  %v977 = vadd.f32 %v969, %v973
  %v978 = vadd.f32 %v970, %v974
  %v979 = vadd.f32 %v971, %v975
  %v980 = vadd.f32 %v972, %v976
  %v981 = vmul.f32 %v417, %v600
  %v982 = vmul.f32 %v405, %v600
  %v983 = vmul.f32 %v407, %v600
  %v984 = vadd.f32 %v981, 0.0
  %v985 = vadd.f32 %v982, 0.0
  %v986 = vadd.f32 %v983, 0.0
  %v987 = vmul.f32 %v446, %v612
  %v988 = vmul.f32 %v434, %v612
  %v989 = vmul.f32 %v436, %v612
  %v990 = vadd.f32 %v987, 0.0
  %v991 = vadd.f32 %v988, 0.0
  %v992 = vadd.f32 %v989, 0.0
  %v993 = vmul.f32 %v475, %v624
  %v994 = vmul.f32 %v463, %v624
  %v995 = vmul.f32 %v465, %v624
  %v996 = vadd.f32 %v993, 0.0
  %v997 = vadd.f32 %v994, 0.0
  %v998 = vadd.f32 %v995, 0.0
  %v999 = vmul.f32 %v504, %v636
  %v1000 = vmul.f32 %v492, %v636
  %v1001 = vmul.f32 %v494, %v636
  %v1002 = vadd.f32 %v999, 0.0
  %v1003 = vadd.f32 %v1000, 0.0
  %v1004 = vadd.f32 %v1001, 0.0
  %v1005 = vmul.f32 %v533, %v648
  %v1006 = vmul.f32 %v521, %v648
  %v1007 = vmul.f32 %v523, %v648
  %v1008 = vadd.f32 %v984, %v1005
  %v1009 = vadd.f32 %v985, %v1006
  %v1010 = vadd.f32 %v986, %v1007
  %v1011 = vmul.f32 %v562, %v660
  %v1012 = vmul.f32 %v550, %v660
  %v1013 = vmul.f32 %v552, %v660
  %v1014 = vadd.f32 %v990, %v1011
  %v1015 = vadd.f32 %v991, %v1012
  %v1016 = vadd.f32 %v992, %v1013
  %v1017 = vmul.f32 %v591, %v672
  %v1018 = vmul.f32 %v579, %v672
  %v1019 = vmul.f32 %v581, %v672
  %v1020 = vadd.f32 %v996, %v1017
  %v1021 = vadd.f32 %v997, %v1018
  %v1022 = vadd.f32 %v998, %v1019
  %v1023 = vmul.f32 %v378, %v684
  %v1024 = vmul.f32 %v379, %v684
  %v1025 = vmul.f32 %v380, %v684
  %v1026 = vadd.f32 %v1002, %v1023
  %v1027 = vadd.f32 %v1003, %v1024
  %v1028 = vadd.f32 %v1004, %v1025
  %v1029 = vmul.f32 %v417, %v696
  %v1030 = vmul.f32 %v405, %v696
  %v1031 = vmul.f32 %v407, %v696
  %v1032 = vmul.f32 %v409, %v696
  %v1033 = vadd.f32 %v653, %v1029
  %v1034 = vadd.f32 %v1008, %v1030
  %v1035 = vadd.f32 %v1009, %v1031
  %v1036 = vadd.f32 %v1010, %v1032
  %v1037 = vmul.f32 %v446, %v708
  %v1038 = vmul.f32 %v434, %v708
  %v1039 = vmul.f32 %v436, %v708
  %v1040 = vmul.f32 %v438, %v708
  %v1041 = vadd.f32 %v665, %v1037
  %v1042 = vadd.f32 %v1014, %v1038
  %v1043 = vadd.f32 %v1015, %v1039
  %v1044 = vadd.f32 %v1016, %v1040
  %v1045 = vmul.f32 %v475, %v720
  %v1046 = vmul.f32 %v463, %v720
  %v1047 = vmul.f32 %v465, %v720
  %v1048 = vmul.f32 %v467, %v720
  %v1049 = vadd.f32 %v677, %v1045
  %v1050 = vadd.f32 %v1020, %v1046
  %v1051 = vadd.f32 %v1021, %v1047
  %v1052 = vadd.f32 %v1022, %v1048
  %v1053 = vmul.f32 %v504, %v732
  %v1054 = vmul.f32 %v492, %v732
  %v1055 = vmul.f32 %v494, %v732
  %v1056 = vmul.f32 %v496, %v732
  %v1057 = vadd.f32 %v689, %v1053
  %v1058 = vadd.f32 %v1026, %v1054
  %v1059 = vadd.f32 %v1027, %v1055
  %v1060 = vadd.f32 %v1028, %v1056
  %v1061 = vmul.f32 %v533, %v744
  %v1062 = vmul.f32 %v521, %v744
  %v1063 = vmul.f32 %v523, %v744
  %v1064 = vmul.f32 %v525, %v744
  %v1065 = vadd.f32 %v1033, %v1061
  %v1066 = vadd.f32 %v1034, %v1062
  %v1067 = vadd.f32 %v1035, %v1063
  %v1068 = vadd.f32 %v1036, %v1064
  %v1069 = vmul.f32 %v562, %v756
  %v1070 = vmul.f32 %v550, %v756
  %v1071 = vmul.f32 %v552, %v756
  %v1072 = vmul.f32 %v554, %v756
  %v1073 = vadd.f32 %v1041, %v1069
  %v1074 = vadd.f32 %v1042, %v1070
  %v1075 = vadd.f32 %v1043, %v1071
  %v1076 = vadd.f32 %v1044, %v1072
  %v1077 = vmul.f32 %v591, %v768
  %v1078 = vmul.f32 %v579, %v768
  %v1079 = vmul.f32 %v581, %v768
  %v1080 = vmul.f32 %v583, %v768
  %v1081 = vadd.f32 %v1049, %v1077
  %v1082 = vadd.f32 %v1050, %v1078
  %v1083 = vadd.f32 %v1051, %v1079
  %v1084 = vadd.f32 %v1052, %v1080
  %v1085 = vmul.f32 %v378, %v780
  %v1086 = vmul.f32 %v379, %v780
  %v1087 = vmul.f32 %v380, %v780
  %v1088 = vmul.f32 %v381, %v780
  %v1089 = vadd.f32 %v1057, %v1085
  %v1090 = vadd.f32 %v1058, %v1086
  %v1091 = vadd.f32 %v1059, %v1087
  %v1092 = vadd.f32 %v1060, %v1088
  %v1093 = vmul.f32 %v405, %v792
  %v1094 = vmul.f32 %v407, %v792
  %v1095 = vmul.f32 %v409, %v792
  %v1096 = vmul.f32 %v418, %v792
  %v1097 = vadd.f32 %v1065, %v1093
  %v1098 = vadd.f32 %v1066, %v1094
  %v1099 = vadd.f32 %v1067, %v1095
  %v1100 = vadd.f32 %v1068, %v1096
  %v1101 = vmul.f32 %v434, %v804
  %v1102 = vmul.f32 %v436, %v804
  %v1103 = vmul.f32 %v438, %v804
  %v1104 = vmul.f32 %v447, %v804
  %v1105 = vadd.f32 %v1073, %v1101
  %v1106 = vadd.f32 %v1074, %v1102
  %v1107 = vadd.f32 %v1075, %v1103
  %v1108 = vadd.f32 %v1076, %v1104
  %v1109 = vmul.f32 %v463, %v816
  %v1110 = vmul.f32 %v465, %v816
  %v1111 = vmul.f32 %v467, %v816
  %v1112 = vmul.f32 %v476, %v816
  %v1113 = vadd.f32 %v1081, %v1109
  %v1114 = vadd.f32 %v1082, %v1110
  %v1115 = vadd.f32 %v1083, %v1111
  %v1116 = vadd.f32 %v1084, %v1112
  %v1117 = vmul.f32 %v492, %v828
  %v1118 = vmul.f32 %v494, %v828
  %v1119 = vmul.f32 %v496, %v828
  %v1120 = vmul.f32 %v505, %v828
  %v1121 = vadd.f32 %v1089, %v1117
  %v1122 = vadd.f32 %v1090, %v1118
  %v1123 = vadd.f32 %v1091, %v1119
  %v1124 = vadd.f32 %v1092, %v1120
  %v1125 = vmul.f32 %v521, %v840
  %v1126 = vmul.f32 %v523, %v840
  %v1127 = vmul.f32 %v525, %v840
  %v1128 = vmul.f32 %v534, %v840
  %v1129 = vadd.f32 %v1097, %v1125
  %v1130 = vadd.f32 %v1098, %v1126
  %v1131 = vadd.f32 %v1099, %v1127
  %v1132 = vadd.f32 %v1100, %v1128
  %v1133 = vmul.f32 %v550, %v852
  %v1134 = vmul.f32 %v552, %v852
  %v1135 = vmul.f32 %v554, %v852
  %v1136 = vmul.f32 %v563, %v852
  %v1137 = vadd.f32 %v1105, %v1133
  %v1138 = vadd.f32 %v1106, %v1134
  %v1139 = vadd.f32 %v1107, %v1135
  %v1140 = vadd.f32 %v1108, %v1136
  %v1141 = vmul.f32 %v579, %v864
  %v1142 = vmul.f32 %v581, %v864
  %v1143 = vmul.f32 %v583, %v864
  %v1144 = vmul.f32 %v592, %v864
  %v1145 = vadd.f32 %v1113, %v1141
  %v1146 = vadd.f32 %v1114, %v1142
  %v1147 = vadd.f32 %v1115, %v1143
  %v1148 = vadd.f32 %v1116, %v1144
  %v1149 = vmul.f32 %v379, %v876
  %v1150 = vmul.f32 %v380, %v876
  %v1151 = vmul.f32 %v381, %v876
  %v1152 = vadd.f32 %v1121, %v1149
  %v1153 = vadd.f32 %v1122, %v1150
  %v1154 = vadd.f32 %v1123, %v1151
  %v1155 = vadd.f32 %v1124, %v880
  %v1156 = vmul.f32 %v407, %v888
  %v1157 = vmul.f32 %v409, %v888
  %v1158 = vmul.f32 %v418, %v888
  %v1159 = vadd.f32 %v1129, %v1156
  %v1160 = vadd.f32 %v1130, %v1157
  %v1161 = vadd.f32 %v1131, %v1158
  %v1162 = vadd.f32 %v1132, %v892
  %v1163 = vmul.f32 %v436, %v900
  %v1164 = vmul.f32 %v438, %v900
  %v1165 = vmul.f32 %v447, %v900
  %v1166 = vadd.f32 %v1137, %v1163
  %v1167 = vadd.f32 %v1138, %v1164
  %v1168 = vadd.f32 %v1139, %v1165
  %v1169 = vadd.f32 %v1140, %v904
  %v1170 = vmul.f32 %v465, %v912
  %v1171 = vmul.f32 %v467, %v912
  %v1172 = vmul.f32 %v476, %v912
  %v1173 = vadd.f32 %v1145, %v1170
  %v1174 = vadd.f32 %v1146, %v1171
  %v1175 = vadd.f32 %v1147, %v1172
  %v1176 = vadd.f32 %v1148, %v916
  %v1177 = vmul.f32 %v494, %v924
  %v1178 = vmul.f32 %v496, %v924
  %v1179 = vmul.f32 %v505, %v924
  %v1180 = vadd.f32 %v1152, %v1177
  %v1181 = vadd.f32 %v1153, %v1178
  %v1182 = vadd.f32 %v1154, %v1179
  %v1183 = vadd.f32 %v1155, %v928
  %v1184 = vmul.f32 %v523, %v936
  %v1185 = vmul.f32 %v525, %v936
  %v1186 = vmul.f32 %v534, %v936
  %v1187 = vadd.f32 %v1159, %v1184
  %v1188 = vadd.f32 %v1160, %v1185
  %v1189 = vadd.f32 %v1161, %v1186
  %v1190 = vadd.f32 %v1162, %v940
  %v1191 = vmul.f32 %v552, %v948
  %v1192 = vmul.f32 %v554, %v948
  %v1193 = vmul.f32 %v563, %v948
  %v1194 = vadd.f32 %v1166, %v1191
  %v1195 = vadd.f32 %v1167, %v1192
  %v1196 = vadd.f32 %v1168, %v1193
  %v1197 = vadd.f32 %v1169, %v952
  %v1198 = vmul.f32 %v581, %v960
  %v1199 = vmul.f32 %v583, %v960
  %v1200 = vmul.f32 %v592, %v960
  %v1201 = vadd.f32 %v1173, %v1198
  %v1202 = vadd.f32 %v1174, %v1199
  %v1203 = vadd.f32 %v1175, %v1200
  %v1204 = vadd.f32 %v1176, %v964
  %v1205 = vadd.f32 %v1187, %v1194
  %v1206 = vadd.f32 %v1188, %v1195
  %v1207 = vadd.f32 %v1189, %v1196
  %v1208 = vadd.f32 %v1190, %v1197
  %v1209 = vadd.f32 %v1201, %v1180
  %v1210 = vadd.f32 %v1202, %v1181
  %v1211 = vadd.f32 %v1203, %v1182
  %v1212 = vadd.f32 %v1204, %v1183
  %v1213 = vadd.f32 %v1205, %v1209
  %v1214 = vadd.f32 %v1206, %v1210
  %v1215 = vadd.f32 %v1207, %v1211
  %v1216 = vadd.f32 %v1208, %v1212
  %v1217 = vlaneseq
  %v1218 = vshrl.u32 %v1217, 7
  %v1219 = vsub.s32 1, %v1218
  %v1220 = vrot.slane %v29, %v1219
  %v1221 = vadd.f32 %v977, %v1220
  %v1222 = vadd.f32 %v978, %v1220
  %v1223 = vadd.f32 %v979, %v1220
  %v1224 = vadd.f32 %v980, %v1220
  %v1225 = vadd.f32 %v1213, %v1220
  %v1226 = vadd.f32 %v1214, %v1220
  %v1227 = vadd.f32 %v1215, %v1220
  %v1228 = vadd.f32 %v1216, %v1220
  %vm1229 = vcmp.ge.f32.partialorder %v1221, 0.0
  %vm1230 = vcmp.ge.f32.partialorder %v1222, 0.0
  %vm1231 = vcmp.ge.f32.partialorder %v1223, 0.0
  %vm1232 = vcmp.ge.f32.partialorder %v1224, 0.0
  %vm1233 = vcmp.ge.f32.partialorder %v1225, 0.0
  %vm1234 = vcmp.ge.f32.partialorder %v1226, 0.0
  %vm1235 = vcmp.ge.f32.partialorder %v1227, 0.0
  %vm1236 = vcmp.ge.f32.partialorder %v1228, 0.0
  %v1237 = vlaneseq
  %v1238 = vshrl.u32 %v1237, 7
  %v1239 = vsub.s32 2, %v1238
  %v1240 = vrot.slane %v29, %v1239
  %v1241 = vmul.f32 %v1240, %v1221
  %v1242 = vmul.f32 %v1240, %v1222
  %v1243 = vmul.f32 %v1240, %v1223
  %v1244 = vmul.f32 %v1240, %v1224
  %v1245 = vmul.f32 %v1240, %v1225
  %v1246 = vmul.f32 %v1240, %v1226
  %v1247 = vmul.f32 %v1240, %v1227
  %v1248 = vmul.f32 %v1240, %v1228
  %v1249 = vsel %vm1229, %v1221, %v1241
  %v1250 = vsel %vm1230, %v1222, %v1242
  %v1251 = vsel %vm1231, %v1223, %v1243
  %v1252 = vsel %vm1232, %v1224, %v1244
  %v1253 = vsel %vm1233, %v1225, %v1245
  %v1254 = vsel %vm1234, %v1226, %v1246
  %v1255 = vsel %vm1235, %v1227, %v1247
  %v1256 = vsel %vm1236, %v1228, %v1248
  %v1257 = vld [vmem:[%s3] sm:$0xff]
  %v1258 = vld [vmem:[%s3 + $0x8] sm:$0xff]
  %v1259 = vld [vmem:[%s3 + $0x10] sm:$0xff]
  %v1260 = vld [vmem:[%s3 + $0x18] sm:$0xff]
  %v1261 = vlaneseq
  %v1262 = vshrl.u32 %v1261, 7
  %v1263 = vsub.s32 3, %v1262
  %v1264 = vrot.slane %v29, %v1263
  %vm1265 = vcmask 261120
  %v1267 = vsel %vm1265, %v1249, 0
  %v1270 = vsel %vm1265, %v1250, 0
  %v1273 = vsel %vm1265, %v1251, 0
  %v1276 = vsel %vm1265, %v1252, 0
  %v1279 = vsel %vm1265, %v1253, 0
  %v1282 = vsel %vm1265, %v1254, 0
  %v1285 = vsel %vm1265, %v1255, 0
  %v1288 = vsel %vm1265, %v1256, 0
  %1290 = vmatprep.subr.mxu0 0.0
  %1291 = vmatpush1.msra.mxu0 %v1257
  %1292 = vmatprep.subr.mxu0 0.0
  %1293 = vmatpush1.msra.mxu0 %v1258
  %1294 = vmatprep.subr.mxu0 0.0
  %1295 = vmatpush1.msra.mxu0 %v1259
  %1296 = vmatprep.subr.mxu0 0.0
  %1297 = vmatpush1.msra.mxu0 %v1260
  %1298 = vmatprep.subr.mxu0 0.0
  %1299 = vmatpush1.msra.mxu0 0.0
  %1300 = vmatprep.subr.mxu0 0.0
  %1301 = vmatpush1.msra.mxu0 0.0
  %1302 = vmatprep.subr.mxu0 0.0
  %1303 = vmatpush1.msra.mxu0 0.0
  %1304 = vmatprep.subr.mxu0 0.0
  %1305 = vmatpush1.msra.mxu0 0.0
  %1306 = vmatprep.subr.mxu0 0.0
  %1307 = vmatpush1.msra.mxu0 0.0
  %1308 = vmatprep.subr.mxu0 0.0
  %1309 = vmatpush1.msra.mxu0 0.0
  %1310 = vmatprep.subr.mxu0 0.0
  %1311 = vmatpush1.msra.mxu0 0.0
  %1312 = vmatprep.subr.mxu0 0.0
  %1313 = vmatpush1.msra.mxu0 0.0
  %1314 = vmatprep.subr.mxu0 0.0
  %1315 = vmatpush1.msra.mxu0 0.0
  %1316 = vmatprep.subr.mxu0 0.0
  %1317 = vmatpush1.msra.mxu0 0.0
  %1318 = vmatprep.subr.mxu0 0.0
  %1319 = vmatpush1.msra.mxu0 0.0
  %1320 = vmatprep.subr.mxu0 0.0
  %1321 = vmatpush1.msra.mxu0 0.0
  %1322 = vmatprep.subr.mxu0 0.0
  %1323 = vmatpush1.msra.mxu0 0.0
  %1324 = vmatprep.subr.mxu0 0.0
  %1325 = vmatpush1.msra.mxu0 0.0
  %1326 = vmatprep.subr.mxu0 0.0
  %1327 = vmatpush1.msra.mxu0 0.0
  %1328 = vmatprep.subr.mxu0 0.0
  %1329 = vmatpush1.msra.mxu0 0.0
  %1330 = vmatprep.subr.mxu0 0.0
  %1331 = vmatpush1.msra.mxu0 0.0
  %1332 = vmatprep.subr.mxu0 0.0
  %1333 = vmatpush1.msra.mxu0 0.0
  %1334 = vmatprep.subr.mxu0 0.0
  %1335 = vmatpush1.msra.mxu0 0.0
  %1336 = vmatprep.subr.mxu0 0.0
  %1337 = vmatpush1.msra.mxu0 0.0
  %1338 = vmatprep.subr.mxu0 0.0
  %1339 = vmatpush1.msra.mxu0 0.0
  %1340 = vmatprep.subr.mxu0 0.0
  %1341 = vmatpush1.msra.mxu0 0.0
  %1342 = vmatprep.subr.mxu0 0.0
  %1343 = vmatpush1.msra.mxu0 0.0
  %1344 = vmatprep.subr.mxu0 0.0
  %1345 = vmatpush1.msra.mxu0 0.0
  %1346 = vmatprep.subr.mxu0 0.0
  %1347 = vmatpush1.msra.mxu0 0.0
  %1348 = vmatprep.subr.mxu0 0.0
  %1349 = vmatpush1.msra.mxu0 0.0
  %1350 = vmatprep.subr.mxu0 0.0
  %1351 = vmatpush1.msra.mxu0 0.0
  %1352 = vmatprep.subr.mxu0 0.0
  %1353 = vmatpush1.msra.mxu0 0.0
  %1354 = vmatprep.mubr.f32.mxu0 0.0
  %1355 = vmatmul.mubr.f32.gmra.mrb[0].mxu0 %v1267
  %v1356 = vpop.f32.mrb[0].mxu0
  %v1357 = vadd.f32 %v1264, %v1356
  %v1358 = vpop.f32.mrb[0].mxu0
  %1359 = vmatprep.mubr.f32.mxu0 0.0
  %1360 = vmatmul.mubr.f32.gmra.mrb[0].mxu0 %v1270
  %v1361 = vpop.f32.mrb[0].mxu0
  %v1362 = vadd.f32 %v1264, %v1361
  %v1363 = vpop.f32.mrb[0].mxu0
  %1364 = vmatprep.mubr.f32.mxu0 0.0
  %1365 = vmatmul.mubr.f32.gmra.mrb[0].mxu0 %v1273
  %v1366 = vpop.f32.mrb[0].mxu0
  %v1367 = vadd.f32 %v1264, %v1366
  %v1368 = vpop.f32.mrb[0].mxu0
  %1369 = vmatprep.mubr.f32.mxu0 0.0
  %1370 = vmatmul.mubr.f32.gmra.mrb[0].mxu0 %v1276
  %v1371 = vpop.f32.mrb[0].mxu0
  %v1372 = vadd.f32 %v1264, %v1371
  %v1373 = vpop.f32.mrb[0].mxu0
  %1374 = vmatprep.mubr.f32.mxu0 0.0
  %1375 = vmatmul.mubr.f32.gmra.mrb[0].mxu0 %v1279
  %v1376 = vpop.f32.mrb[0].mxu0
  %v1377 = vadd.f32 %v1264, %v1376
  %v1378 = vpop.f32.mrb[0].mxu0
  %1379 = vmatprep.mubr.f32.mxu0 0.0
  %1380 = vmatmul.mubr.f32.gmra.mrb[0].mxu0 %v1282
  %v1381 = vpop.f32.mrb[0].mxu0
  %v1382 = vadd.f32 %v1264, %v1381
  %v1383 = vpop.f32.mrb[0].mxu0
  %1384 = vmatprep.mubr.f32.mxu0 0.0
  %1385 = vmatmul.mubr.f32.gmra.mrb[0].mxu0 %v1285
  %v1386 = vpop.f32.mrb[0].mxu0
  %v1387 = vadd.f32 %v1264, %v1386
  %v1388 = vpop.f32.mrb[0].mxu0
  %1389 = vmatprep.mubr.f32.mxu0 0.0
  %1390 = vmatmul.mubr.f32.gmra.mrb[0].mxu0 %v1288
  %v1391 = vpop.f32.mrb[0].mxu0
  %v1392 = vadd.f32 %v1264, %v1391
  %v1393 = vpop.f32.mrb[0].mxu0
  %1394 = vdwg.mxu0
  %1395 = vst.msk [vmem:[%s5] sm:$0xff] %vm30, %v1357
  %1396 = vst.msk [vmem:[%s5 + $0x8] sm:$0xff] %vm30, %v1362
  %1397 = vst.msk [vmem:[%s5 + $0x10] sm:$0xff] %vm30, %v1367
  %1398 = vst.msk [vmem:[%s5 + $0x18] sm:$0xff] %vm30, %v1372
  %s1399 = scalar_lea.vmem %s5, 32
  %1400 = vst.msk [vmem:[%s1399] sm:$0xff] %vm30, %v1377
  %1401 = vst.msk [vmem:[%s1399 + $0x8] sm:$0xff] %vm30, %v1382
  %1402 = vst.msk [vmem:[%s1399 + $0x10] sm:$0xff] %vm30, %v1387
  %1403 = vst.msk [vmem:[%s1399 + $0x18] sm:$0xff] %vm30, %v1392
  // Predicated region
  $region22: #{tpu_custom_call.1} parent=0 // pred_check
    _
  $region23: #{tpu_custom_call.1} parent=0 // pred_check_branch
    %1405 = sbr.rel (0) target = $region25
  $region24: #{tpu_custom_call.1} parent=0 // pred_region
    _
  $region25: #{tpu_custom_call.1} parent=0 // pred_fallthru
    _
  // Predicated region
  $region26: #{tpu_custom_call.1} parent=0 // pred_check
    _
  $region27: #{tpu_custom_call.1} parent=0 // pred_check_branch
    %1407 = sbr.rel (0) target = $region29
  $region28: #{tpu_custom_call.1} parent=0 // pred_region
    _
  $region29: #{tpu_custom_call.1} parent=0 // pred_fallthru
    _

</llo_original>
